<compile_context>
chip_gen: v7x
topology: tpu7x:2x2x1
jax: 0.10.0
libtpu: 0.0.40
codegen_flags: <defaults>
</compile_context>

<pallas_src>
import jax
import jax.numpy as jnp
from jax.experimental import pallas as pl
from jax.experimental.pallas import tpu as pltpu

H = 128        # hidden width
OUT = 4        # true output width
W5_PAD = 128   # padded W5 columns (clean 128x128 MXU pass; padding never stored)


def orbitnet_kernel(t_ref,
                    w1_ref, b1_ref,
                    w2_ref, b2_ref,
                    w3_ref, b3_ref,
                    w4_ref, b4_ref,
                    w5_ref, b5_ref,
                    o_ref):
    # Layer 1: (tm,1) @ (1,128) is a rank-1 outer product -> pure VPU broadcast
    # (keeps the MXU free for the 128x128 layers).
    h = t_ref[...] * w1_ref[...] + b1_ref[...]
    h = jnp.maximum(h, 0.0)

    def dense(h, w_ref, b_ref):
        # Matmul operands may be bf16 (MXU-native on v5e/v6e/v7x);
        # accumulation, bias add and ReLU stay f32 (v5e has no bf16 VPU).
        return jnp.dot(h.astype(w_ref.dtype), w_ref[...],
                       preferred_element_type=jnp.float32) + b_ref[...]

    h = jnp.maximum(dense(h, w2_ref, b2_ref), 0.0)
    h = jnp.maximum(dense(h, w3_ref, b3_ref), 0.0)
    h = jnp.maximum(dense(h, w4_ref, b4_ref), 0.0)

    # Final layer: padded 128x128 MXU pass, but store ONLY the 4 real columns
    # (HBM writeback is 16 B/row instead of 512 B/row).
    o_full = dense(h, w5_ref, b5_ref)            # (tm, 128); cols 4..127 are pad
    o_ref[...] = o_full[:, :OUT].astype(o_ref.dtype)


def prepare_weights(params, *, use_bf16=True):
    """One-time weight prep (hoisted out of the per-call path)."""
    (w1, b1), (w2, b2), (w3, b3), (w4, b4), (w5, b5) = params
    cdt = jnp.bfloat16 if use_bf16 else jnp.float32
    # Zero-pad W5/b5 to 128 output columns for a clean MXU pass (exact; pad never stored).
    w5p = jnp.pad(w5, ((0, 0), (0, W5_PAD - OUT)))
    b5p = jnp.pad(b5, ((0, 0), (0, W5_PAD - OUT)))
    return [w1.astype(jnp.float32), b1.astype(jnp.float32),
            w2.astype(cdt), b2.astype(jnp.float32),
            w3.astype(cdt), b3.astype(jnp.float32),
            w4.astype(cdt), b4.astype(jnp.float32),
            w5p.astype(cdt), b5p.astype(jnp.float32)]


def orbitnet_forward(t, weights, *, tm=4096):
    """t: (N, 1) float32, weights: output of prepare_weights. Returns (N, 4) float32."""
    N = t.shape[0]

    # Batch tile: multiple of 8 (sublane), and clamped so the grid has >= 2 steps
    # whenever N >= 16 -- on v7x the "parallel" axis shards across the 2 TensorCores,
    # so a single-step grid would halve throughput there.
    half = max(8, ((N // 2) // 8) * 8)
    tm_eff = max(8, min(tm, half))
    n_pad = (-N) % tm_eff
    if n_pad:
        t = jnp.pad(t, ((0, n_pad), (0, 0)))
    Np = N + n_pad
    grid = (Np // tm_eff,)

    def full_spec(arr):
        # Whole array, constant block index -> weights stay resident in VMEM
        # (not re-DMA'd per grid step).
        return pl.BlockSpec(arr.shape, lambda i: (0, 0))

    in_specs = [pl.BlockSpec((tm_eff, 1), lambda i: (i, 0))] + [full_spec(a) for a in weights]
    out_specs = pl.BlockSpec((tm_eff, OUT), lambda i: (i, 0))

    # VMEM estimate: the (tm,1) t block and the (tm,4) out block are lane-padded to
    # 128 f32 lanes (512 B/row each, double-buffered) plus ~4 live (tm,128) f32
    # activation slabs and <0.5 MiB of resident weights.  Clamp to [16, 48] MiB so the
    # request stays inside v7x's 64 MiB physical VMEM while covering tm sweeps to 8192
    # on v5e/v6e.
    vmem_est = 4 * tm_eff * 128 * 8 + (4 << 20)
    vmem_limit = int(max(16 << 20, min(vmem_est, 48 << 20)))

    out = pl.pallas_call(
        orbitnet_kernel,
        out_shape=jax.ShapeDtypeStruct((Np, OUT), jnp.float32),
        grid_spec=pltpu.PrefetchScalarGridSpec(
            num_scalar_prefetch=0,
            grid=grid,
            in_specs=in_specs,
            out_specs=out_specs,
        ),
        compiler_params=pltpu.CompilerParams(
            dimension_semantics=("parallel",),
            vmem_limit_bytes=vmem_limit,
        ),
    )(t, *weights)

    return out[:N]


def init_params(key):
    """Deterministic init mimicking PyTorch's default Linear init
    (uniform(-1/sqrt(fan_in), 1/sqrt(fan_in))). Biases kept as (1, out) rows."""
    dims = [(1, H), (H, H), (H, H), (H, H), (H, OUT)]
    params = []
    for (fan_in, fan_out) in dims:
        key, kw, kb = jax.random.split(key, 3)
        bound = 1.0 / jnp.sqrt(jnp.float32(fan_in))
        w = jax.random.uniform(kw, (fan_in, fan_out), jnp.float32, -bound, bound)
        b = jax.random.uniform(kb, (1, fan_out), jnp.float32, -bound, bound)
        params.append((w, b))
    return params


def reference_forward(t, params):
    h = t
    for i, (w, b) in enumerate(params):
        h = h @ w + b
        if i < len(params) - 1:
            h = jnp.maximum(h, 0.0)
    return h


if __name__ == "__main__":
    key = jax.random.PRNGKey(0)
    kp, kt = jax.random.split(key)
    params = init_params(kp)

    N = 256  # time points t, shape (N, 1) as the module's forward implies
    t = jax.random.uniform(kt, (N, 1), jnp.float32, 0.0, 1.0)

    # Reference at highest matmul precision (avoid spurious bf16-lowering mismatches).
    with jax.default_matmul_precision("highest"):
        ref = reference_forward(t, params)

    fwd = jax.jit(orbitnet_forward, static_argnames=("tm",))

    # f32 path (N=256 -> tm_eff=128, grid=(2,): both v7x TCs get a tile).
    w_f32 = prepare_weights(params, use_bf16=False)
    out_f32 = jax.block_until_ready(fwd(t, w_f32))
    assert out_f32.shape == (N, OUT)
    assert jnp.allclose(out_f32, ref, atol=2e-4, rtol=2e-4), "f32 Pallas output mismatch"

    # bf16-operand / f32-accumulation path (MXU-native); quantization error compounds
    # over 4 layers, hence the looser tolerance.
    w_bf16 = prepare_weights(params, use_bf16=True)
    out_bf16 = jax.block_until_ready(fwd(t, w_bf16))
    assert out_bf16.shape == (N, OUT)
    denom = float(jnp.maximum(jnp.max(jnp.abs(ref)), 1.0))
    rel_err = float(jnp.max(jnp.abs(out_bf16 - ref))) / denom
    assert rel_err < 2e-2, f"bf16 Pallas output mismatch (rel_err={rel_err})"

    print("KERNEL_OK")
</pallas_src>

<mosaic_0001>
module attributes {stable_mosaic.version = 11 : i64} {
  func.func @orbitnet_kernel(%arg0: i32, %arg1: memref<128x1xf32, #tpu.memory_space<vmem>>, %arg2: memref<1x128xf32, #tpu.memory_space<vmem>>, %arg3: memref<1x128xf32, #tpu.memory_space<vmem>>, %arg4: memref<128x128xf32, #tpu.memory_space<vmem>>, %arg5: memref<1x128xf32, #tpu.memory_space<vmem>>, %arg6: memref<128x128xf32, #tpu.memory_space<vmem>>, %arg7: memref<1x128xf32, #tpu.memory_space<vmem>>, %arg8: memref<128x128xf32, #tpu.memory_space<vmem>>, %arg9: memref<1x128xf32, #tpu.memory_space<vmem>>, %arg10: memref<128x128xf32, #tpu.memory_space<vmem>>, %arg11: memref<1x128xf32, #tpu.memory_space<vmem>>, %arg12: memref<128x4xf32, #tpu.memory_space<vmem>>) attributes {dimension_semantics = [#tpu.dimension_semantics<parallel>], iteration_bounds = array<i64: 2>, scalar_prefetch = 0 : i64, scratch_operands = 0 : i64, tpu.core_type = #tpu.core_type<tc>, window_params = [{transform_indices = @transform_0, window_bounds = array<i64: 128, 1>}, {pipeline_mode = #tpu.pipeline_mode<synchronous>, transform_indices = @transform_1, window_bounds = array<i64: 1, 128>}, {pipeline_mode = #tpu.pipeline_mode<synchronous>, transform_indices = @transform_2, window_bounds = array<i64: 1, 128>}, {pipeline_mode = #tpu.pipeline_mode<synchronous>, transform_indices = @transform_3, window_bounds = array<i64: 128, 128>}, {pipeline_mode = #tpu.pipeline_mode<synchronous>, transform_indices = @transform_4, window_bounds = array<i64: 1, 128>}, {pipeline_mode = #tpu.pipeline_mode<synchronous>, transform_indices = @transform_5, window_bounds = array<i64: 128, 128>}, {pipeline_mode = #tpu.pipeline_mode<synchronous>, transform_indices = @transform_6, window_bounds = array<i64: 1, 128>}, {pipeline_mode = #tpu.pipeline_mode<synchronous>, transform_indices = @transform_7, window_bounds = array<i64: 128, 128>}, {pipeline_mode = #tpu.pipeline_mode<synchronous>, transform_indices = @transform_8, window_bounds = array<i64: 1, 128>}, {pipeline_mode = #tpu.pipeline_mode<synchronous>, transform_indices = @transform_9, window_bounds = array<i64: 128, 128>}, {pipeline_mode = #tpu.pipeline_mode<synchronous>, transform_indices = @transform_10, window_bounds = array<i64: 1, 128>}, {transform_indices = @transform_11, window_bounds = array<i64: 128, 4>}]} {
    %c0 = arith.constant 0 : index
    %c0_0 = arith.constant 0 : index
    %0 = vector.load %arg1[%c0, %c0_0] : memref<128x1xf32, #tpu.memory_space<vmem>>, vector<128x1xf32>
    %c0_1 = arith.constant 0 : index
    %c0_2 = arith.constant 0 : index
    %1 = vector.load %arg2[%c0_1, %c0_2] : memref<1x128xf32, #tpu.memory_space<vmem>>, vector<1x128xf32>
    %2 = vector.broadcast %0 : vector<128x1xf32> to vector<128x128xf32>
    %3 = vector.broadcast %1 : vector<1x128xf32> to vector<128x128xf32>
    %4 = arith.mulf %2, %3 : vector<128x128xf32>
    %c0_3 = arith.constant 0 : index
    %c0_4 = arith.constant 0 : index
    %5 = vector.load %arg3[%c0_3, %c0_4] : memref<1x128xf32, #tpu.memory_space<vmem>>, vector<1x128xf32>
    %6 = vector.broadcast %5 : vector<1x128xf32> to vector<128x128xf32>
    %7 = arith.addf %4, %6 : vector<128x128xf32>
    %cst = arith.constant 0.000000e+00 : f32
    %8 = vector.broadcast %cst : f32 to vector<128x128xf32>
    %9 = arith.maximumf %7, %8 : vector<128x128xf32>
    %c0_5 = arith.constant 0 : index
    %c0_6 = arith.constant 0 : index
    %10 = vector.load %arg4[%c0_5, %c0_6] : memref<128x128xf32, #tpu.memory_space<vmem>>, vector<128x128xf32>
    %cst_7 = arith.constant dense<0.000000e+00> : vector<128x128xf32>
    %11 = tpu.matmul %9, %10, %cst_7 {dimension_numbers = #tpu.dot_dimension_numbers<[1], [0], [0], [1], [0, 0, 1, 1], [], []>} : vector<128x128xf32>, vector<128x128xf32>, vector<128x128xf32> -> vector<128x128xf32>
    %c0_8 = arith.constant 0 : index
    %c0_9 = arith.constant 0 : index
    %12 = vector.load %arg5[%c0_8, %c0_9] : memref<1x128xf32, #tpu.memory_space<vmem>>, vector<1x128xf32>
    %13 = vector.broadcast %12 : vector<1x128xf32> to vector<128x128xf32>
    %14 = arith.addf %11, %13 : vector<128x128xf32>
    %cst_10 = arith.constant 0.000000e+00 : f32
    %15 = vector.broadcast %cst_10 : f32 to vector<128x128xf32>
    %16 = arith.maximumf %14, %15 : vector<128x128xf32>
    %c0_11 = arith.constant 0 : index
    %c0_12 = arith.constant 0 : index
    %17 = vector.load %arg6[%c0_11, %c0_12] : memref<128x128xf32, #tpu.memory_space<vmem>>, vector<128x128xf32>
    %cst_13 = arith.constant dense<0.000000e+00> : vector<128x128xf32>
    %18 = tpu.matmul %16, %17, %cst_13 {dimension_numbers = #tpu.dot_dimension_numbers<[1], [0], [0], [1], [0, 0, 1, 1], [], []>} : vector<128x128xf32>, vector<128x128xf32>, vector<128x128xf32> -> vector<128x128xf32>
    %c0_14 = arith.constant 0 : index
    %c0_15 = arith.constant 0 : index
    %19 = vector.load %arg7[%c0_14, %c0_15] : memref<1x128xf32, #tpu.memory_space<vmem>>, vector<1x128xf32>
    %20 = vector.broadcast %19 : vector<1x128xf32> to vector<128x128xf32>
    %21 = arith.addf %18, %20 : vector<128x128xf32>
    %cst_16 = arith.constant 0.000000e+00 : f32
    %22 = vector.broadcast %cst_16 : f32 to vector<128x128xf32>
    %23 = arith.maximumf %21, %22 : vector<128x128xf32>
    %c0_17 = arith.constant 0 : index
    %c0_18 = arith.constant 0 : index
    %24 = vector.load %arg8[%c0_17, %c0_18] : memref<128x128xf32, #tpu.memory_space<vmem>>, vector<128x128xf32>
    %cst_19 = arith.constant dense<0.000000e+00> : vector<128x128xf32>
    %25 = tpu.matmul %23, %24, %cst_19 {dimension_numbers = #tpu.dot_dimension_numbers<[1], [0], [0], [1], [0, 0, 1, 1], [], []>} : vector<128x128xf32>, vector<128x128xf32>, vector<128x128xf32> -> vector<128x128xf32>
    %c0_20 = arith.constant 0 : index
    %c0_21 = arith.constant 0 : index
    %26 = vector.load %arg9[%c0_20, %c0_21] : memref<1x128xf32, #tpu.memory_space<vmem>>, vector<1x128xf32>
    %27 = vector.broadcast %26 : vector<1x128xf32> to vector<128x128xf32>
    %28 = arith.addf %25, %27 : vector<128x128xf32>
    %cst_22 = arith.constant 0.000000e+00 : f32
    %29 = vector.broadcast %cst_22 : f32 to vector<128x128xf32>
    %30 = arith.maximumf %28, %29 : vector<128x128xf32>
    %c0_23 = arith.constant 0 : index
    %c0_24 = arith.constant 0 : index
    %31 = vector.load %arg10[%c0_23, %c0_24] : memref<128x128xf32, #tpu.memory_space<vmem>>, vector<128x128xf32>
    %cst_25 = arith.constant dense<0.000000e+00> : vector<128x128xf32>
    %32 = tpu.matmul %30, %31, %cst_25 {dimension_numbers = #tpu.dot_dimension_numbers<[1], [0], [0], [1], [0, 0, 1, 1], [], []>} : vector<128x128xf32>, vector<128x128xf32>, vector<128x128xf32> -> vector<128x128xf32>
    %c0_26 = arith.constant 0 : index
    %c0_27 = arith.constant 0 : index
    %33 = vector.load %arg11[%c0_26, %c0_27] : memref<1x128xf32, #tpu.memory_space<vmem>>, vector<1x128xf32>
    %34 = vector.broadcast %33 : vector<1x128xf32> to vector<128x128xf32>
    %35 = arith.addf %32, %34 : vector<128x128xf32>
    %36 = vector.extract_strided_slice %35 {offsets = [0, 0], sizes = [128, 4], strides = [1, 1]} : vector<128x128xf32> to vector<128x4xf32>
    %c0_28 = arith.constant 0 : index
    %c0_29 = arith.constant 0 : index
    %37 = vector.load %arg12[%c0_28, %c0_29] : memref<128x4xf32, #tpu.memory_space<vmem>>, vector<128x4xf32>
    tpu.vector_store %arg12[%c0_28, %c0_29], %36 {strides = array<i32>} : memref<128x4xf32, #tpu.memory_space<vmem>>, vector<128x4xf32>,
    return
  }
  func.func @transform_0(%arg0: i32) -> (i32, i32) {
    %c0_i32 = arith.constant 0 : i32
    %c0_i32_0 = arith.constant 0 : i32
    return %arg0, %c0_i32 : i32, i32
  }
  func.func @transform_1(%arg0: i32) -> (i32, i32) {
    %c0_i32 = arith.constant 0 : i32
    %c0_i32_0 = arith.constant 0 : i32
    %c0_i32_1 = arith.constant 0 : i32
    return %c0_i32, %c0_i32_0 : i32, i32
  }
  func.func @transform_2(%arg0: i32) -> (i32, i32) {
    %c0_i32 = arith.constant 0 : i32
    %c0_i32_0 = arith.constant 0 : i32
    %c0_i32_1 = arith.constant 0 : i32
    return %c0_i32, %c0_i32_0 : i32, i32
  }
  func.func @transform_3(%arg0: i32) -> (i32, i32) {
    %c0_i32 = arith.constant 0 : i32
    %c0_i32_0 = arith.constant 0 : i32
    %c0_i32_1 = arith.constant 0 : i32
    return %c0_i32, %c0_i32_0 : i32, i32
  }
  func.func @transform_4(%arg0: i32) -> (i32, i32) {
    %c0_i32 = arith.constant 0 : i32
    %c0_i32_0 = arith.constant 0 : i32
    %c0_i32_1 = arith.constant 0 : i32
    return %c0_i32, %c0_i32_0 : i32, i32
  }
  func.func @transform_5(%arg0: i32) -> (i32, i32) {
    %c0_i32 = arith.constant 0 : i32
    %c0_i32_0 = arith.constant 0 : i32
    %c0_i32_1 = arith.constant 0 : i32
    return %c0_i32, %c0_i32_0 : i32, i32
  }
  func.func @transform_6(%arg0: i32) -> (i32, i32) {
    %c0_i32 = arith.constant 0 : i32
    %c0_i32_0 = arith.constant 0 : i32
    %c0_i32_1 = arith.constant 0 : i32
    return %c0_i32, %c0_i32_0 : i32, i32
  }
  func.func @transform_7(%arg0: i32) -> (i32, i32) {
    %c0_i32 = arith.constant 0 : i32
    %c0_i32_0 = arith.constant 0 : i32
    %c0_i32_1 = arith.constant 0 : i32
    return %c0_i32, %c0_i32_0 : i32, i32
  }
  func.func @transform_8(%arg0: i32) -> (i32, i32) {
    %c0_i32 = arith.constant 0 : i32
    %c0_i32_0 = arith.constant 0 : i32
    %c0_i32_1 = arith.constant 0 : i32
    return %c0_i32, %c0_i32_0 : i32, i32
  }
  func.func @transform_9(%arg0: i32) -> (i32, i32) {
    %c0_i32 = arith.constant 0 : i32
    %c0_i32_0 = arith.constant 0 : i32
    %c0_i32_1 = arith.constant 0 : i32
    return %c0_i32, %c0_i32_0 : i32, i32
  }
  func.func @transform_10(%arg0: i32) -> (i32, i32) {
    %c0_i32 = arith.constant 0 : i32
    %c0_i32_0 = arith.constant 0 : i32
    %c0_i32_1 = arith.constant 0 : i32
    return %c0_i32, %c0_i32_0 : i32, i32
  }
  func.func @transform_11(%arg0: i32) -> (i32, i32) {
    %c0_i32 = arith.constant 0 : i32
    %c0_i32_0 = arith.constant 0 : i32
    return %arg0, %c0_i32 : i32, i32
  }
}

</mosaic_0001>

<llo_original>
// kernel: orbitnet_forward.1
$region0: #{orbitnet_forward.1}
  #allocation0 [shape = 'u32[]', space=smem, size = 0x4, offset = 0x4, fixed_abs, tag = 'smem constant byte address 0x4 - core index']
  #allocation1 [shape = 'u32[144,128]{1,0:T(1,128)}', space=vmem, size = 0x12000, scoped, tag = 'internal scratch']
  %s0 = inlined_call_operand.vmem [shape: f32[256,1], index: 0, kind: input, shape index: {}]
  %s1 = inlined_call_operand.vmem [shape: f32[1,128], index: 1, kind: input, shape index: {}]
  %s2 = inlined_call_operand.vmem [shape: f32[1,128], index: 2, kind: input, shape index: {}]
  %s3 = inlined_call_operand.vmem [shape: f32[128,128], index: 3, kind: input, shape index: {}]
  %s4 = inlined_call_operand.vmem [shape: f32[1,128], index: 4, kind: input, shape index: {}]
  %s5 = inlined_call_operand.vmem [shape: f32[128,128], index: 5, kind: input, shape index: {}]
  %s6 = inlined_call_operand.vmem [shape: f32[1,128], index: 6, kind: input, shape index: {}]
  %s7 = inlined_call_operand.hbm [shape: f32[128,128], index: 7, kind: input, shape index: {}]
  %s8 = inlined_call_operand.vmem [shape: f32[1,128], index: 8, kind: input, shape index: {}]
  %s9 = inlined_call_operand.hbm [shape: f32[128,128], index: 9, kind: input, shape index: {}]
  %s10 = inlined_call_operand.vmem [shape: f32[1,128], index: 10, kind: input, shape index: {}]
  %s11 = inlined_call_operand.vmem [shape: f32[256,4], index: 11, kind: output, shape index: {}]
  %s12 = sld [smem:[#allocation0]]
  $region85: #{orbitnet_forward.1} parent=0
    _
  %s14 = ssub.s32 1, %s12
  %s15 = scalar_select 0, %s14, %s12
  $region1: #{orbitnet_forward.1} parent=0
    #allocation2 [shape = 'u8[65536]{0}', space=vmem, size = 0x10000, scoped, tag = 'input window, operand 7, single buffered']
    #allocation3 [shape = 's32[2]{0}', space=sflag, size = 0x8, scoped, tag = 'scoped memory for orbitnet_forward.1']
    #allocation4 [shape = 'u8[65536]{0}', space=vmem, size = 0x10000, scoped, tag = 'input window, operand 9, single buffered']
    #allocation5 [shape = 's32[1]{0}', space=sflag, size = 0x4, scoped, tag = 'scoped memory for orbitnet_forward.1']
    %16 = vsyncpa [#allocation3], 0
    %17 = vsyncpa [#allocation5], 0
    loop: start=0, step=1, limit=4
    $region2: #{orbitnet_forward.1} parent=1 // loop_pre_header
      _
    $region3: #{orbitnet_forward.1} parent=1 // loop_header
      %s19 = sphi 0, %s23
      %p20 = scmp.ge.s32.totalorder %s19, 4
      %s29 = sphi 0, %s31
      %s32 = sphi 0, %s29
      %s33 = sphi 0, %s32
      %s49 = sphi 0, %s33
      %s53 = sphi 0, %s53
      %s55 = sphi 0, %s53
      %s56 = sphi 0, %s55
      %s70 = sphi 0, %s56
      %s74 = sphi 0, %s74
      %s76 = sphi 0, %s74
      %s77 = sphi 0, %s76
      %s91 = sphi 0, %s77
      %s95 = sphi 0, %s95
      %s97 = sphi 0, %s95
      %s98 = sphi 0, %s97
      %s112 = sphi 0, %s98
      %s116 = sphi 0, %s116
      %s118 = sphi 0, %s116
      %s119 = sphi 0, %s118
      %s133 = sphi 0, %s119
      %s137 = sphi 0, %s137
      %s139 = sphi 0, %s137
      %s140 = sphi 0, %s139
      %s154 = sphi 0, %s140
      %s158 = sphi 0, %s158
      %s160 = sphi 0, %s158
      %s161 = sphi 0, %s160
      %s175 = sphi 0, %s161
      %s179 = sphi 0, %s179
      %s181 = sphi 0, %s179
      %s182 = sphi 0, %s181
      %s196 = sphi 0, %s182
      %s200 = sphi 0, %s200
      %s202 = sphi 0, %s200
      %s203 = sphi 0, %s202
      %s217 = sphi 0, %s203
      %s221 = sphi 0, %s221
      %s223 = sphi 0, %s221
      %s224 = sphi 0, %s223
      %s238 = sphi 0, %s224
      %s242 = sphi 0, %s242
      %s244 = sphi 0, %s242
      %s245 = sphi 0, %s244
      %s259 = sphi 0, %s245
      %s265 = sphi 0, %s267
      %s268 = sphi 0, %s265
      %s269 = sphi 0, %s268
      %s285 = sphi 0, %s269
    $region4: #{orbitnet_forward.1} parent=1 // loop_header_branch
      %22 = sbr.rel (%p20) target = $region8
    $region5: #{orbitnet_forward.1} parent=1 // loop_body
      %s24 = ssub.s32 %s19, 1
      %s25 = ssub.s32 %s19, 2
      %s26 = sadd.s32 %s19, 1
      %s27 = ssub.s32 %s19, %s26
      %p28 = scmp.eq.s32.totalorder %s27, 0
      %s30 = sadd.s32 %s29, 1
      %s31 = scalar_select %p28, %s29, %s30
      %p34 = pneg %p28
      %p35 = scmp.eq.s32.totalorder %s19, 1
      %p36 = por %p34, %p35
      %p37 = scmp.ne.s32.totalorder %s29, %s32
      %p38 = scmp.eq.s32.totalorder %s19, 0
      %p39 = por %p37, %p38
      %p40 = scmp.ne.s32.totalorder %s29, %s32
      %p41 = scmp.eq.s32.totalorder %s24, 1
      %p42 = por %p40, %p41
      %p43 = scmp.ne.s32.totalorder %s32, %s33
      %p44 = scmp.eq.s32.totalorder %s24, 0
      %p45 = por %p43, %p44
      %p46 = scmp.ne.s32.totalorder %s32, %s33
      %p47 = scmp.eq.s32.totalorder %s25, 1
      %p48 = por %p46, %p47
      %p50 = scmp.ne.s32.totalorder %s33, %s49
      %p51 = scmp.eq.s32.totalorder %s25, 0
      %p52 = por %p50, %p51
      %s54 = sadd.s32 %s53, 1
      %p57 = scmp.eq.s32.totalorder %s19, 1
      %p58 = scmp.ne.s32.totalorder %s53, %s55
      %p59 = scmp.eq.s32.totalorder %s19, 0
      %p60 = por %p58, %p59
      %p61 = scmp.ne.s32.totalorder %s53, %s55
      %p62 = scmp.eq.s32.totalorder %s24, 1
      %p63 = por %p61, %p62
      %p64 = scmp.ne.s32.totalorder %s55, %s56
      %p65 = scmp.eq.s32.totalorder %s24, 0
      %p66 = por %p64, %p65
      %p67 = scmp.ne.s32.totalorder %s55, %s56
      %p68 = scmp.eq.s32.totalorder %s25, 1
      %p69 = por %p67, %p68
      %p71 = scmp.ne.s32.totalorder %s56, %s70
      %p72 = scmp.eq.s32.totalorder %s25, 0
      %p73 = por %p71, %p72
      %s75 = sadd.s32 %s74, 1
      %p78 = scmp.eq.s32.totalorder %s19, 1
      %p79 = scmp.ne.s32.totalorder %s74, %s76
      %p80 = scmp.eq.s32.totalorder %s19, 0
      %p81 = por %p79, %p80
      %p82 = scmp.ne.s32.totalorder %s74, %s76
      %p83 = scmp.eq.s32.totalorder %s24, 1
      %p84 = por %p82, %p83
      %p85 = scmp.ne.s32.totalorder %s76, %s77
      %p86 = scmp.eq.s32.totalorder %s24, 0
      %p87 = por %p85, %p86
      %p88 = scmp.ne.s32.totalorder %s76, %s77
      %p89 = scmp.eq.s32.totalorder %s25, 1
      %p90 = por %p88, %p89
      %p92 = scmp.ne.s32.totalorder %s77, %s91
      %p93 = scmp.eq.s32.totalorder %s25, 0
      %p94 = por %p92, %p93
      %s96 = sadd.s32 %s95, 1
      %p99 = scmp.eq.s32.totalorder %s19, 1
      %p100 = scmp.ne.s32.totalorder %s95, %s97
      %p101 = scmp.eq.s32.totalorder %s19, 0
      %p102 = por %p100, %p101
      %p103 = scmp.ne.s32.totalorder %s95, %s97
      %p104 = scmp.eq.s32.totalorder %s24, 1
      %p105 = por %p103, %p104
      %p106 = scmp.ne.s32.totalorder %s97, %s98
      %p107 = scmp.eq.s32.totalorder %s24, 0
      %p108 = por %p106, %p107
      %p109 = scmp.ne.s32.totalorder %s97, %s98
      %p110 = scmp.eq.s32.totalorder %s25, 1
      %p111 = por %p109, %p110
      %p113 = scmp.ne.s32.totalorder %s98, %s112
      %p114 = scmp.eq.s32.totalorder %s25, 0
      %p115 = por %p113, %p114
      %s117 = sadd.s32 %s116, 1
      %p120 = scmp.eq.s32.totalorder %s19, 1
      %p121 = scmp.ne.s32.totalorder %s116, %s118
      %p122 = scmp.eq.s32.totalorder %s19, 0
      %p123 = por %p121, %p122
      %p124 = scmp.ne.s32.totalorder %s116, %s118
      %p125 = scmp.eq.s32.totalorder %s24, 1
      %p126 = por %p124, %p125
      %p127 = scmp.ne.s32.totalorder %s118, %s119
      %p128 = scmp.eq.s32.totalorder %s24, 0
      %p129 = por %p127, %p128
      %p130 = scmp.ne.s32.totalorder %s118, %s119
      %p131 = scmp.eq.s32.totalorder %s25, 1
      %p132 = por %p130, %p131
      %p134 = scmp.ne.s32.totalorder %s119, %s133
      %p135 = scmp.eq.s32.totalorder %s25, 0
      %p136 = por %p134, %p135
      %s138 = sadd.s32 %s137, 1
      %p141 = scmp.eq.s32.totalorder %s19, 1
      %p142 = scmp.ne.s32.totalorder %s137, %s139
      %p143 = scmp.eq.s32.totalorder %s19, 0
      %p144 = por %p142, %p143
      %p145 = scmp.ne.s32.totalorder %s137, %s139
      %p146 = scmp.eq.s32.totalorder %s24, 1
      %p147 = por %p145, %p146
      %p148 = scmp.ne.s32.totalorder %s139, %s140
      %p149 = scmp.eq.s32.totalorder %s24, 0
      %p150 = por %p148, %p149
      %p151 = scmp.ne.s32.totalorder %s139, %s140
      %p152 = scmp.eq.s32.totalorder %s25, 1
      %p153 = por %p151, %p152
      %p155 = scmp.ne.s32.totalorder %s140, %s154
      %p156 = scmp.eq.s32.totalorder %s25, 0
      %p157 = por %p155, %p156
      %s159 = sadd.s32 %s158, 1
      %p162 = scmp.eq.s32.totalorder %s19, 1
      %p163 = scmp.ne.s32.totalorder %s158, %s160
      %p164 = scmp.eq.s32.totalorder %s19, 0
      %p165 = por %p163, %p164
      %p166 = scmp.ne.s32.totalorder %s158, %s160
      %p167 = scmp.eq.s32.totalorder %s24, 1
      %p168 = por %p166, %p167
      %p169 = scmp.ne.s32.totalorder %s160, %s161
      %p170 = scmp.eq.s32.totalorder %s24, 0
      %p171 = por %p169, %p170
      %p172 = scmp.ne.s32.totalorder %s160, %s161
      %p173 = scmp.eq.s32.totalorder %s25, 1
      %p174 = por %p172, %p173
      %p176 = scmp.ne.s32.totalorder %s161, %s175
      %p177 = scmp.eq.s32.totalorder %s25, 0
      %p178 = por %p176, %p177
      %s180 = sadd.s32 %s179, 1
      %p183 = scmp.eq.s32.totalorder %s19, 1
      %p184 = scmp.ne.s32.totalorder %s179, %s181
      %p185 = scmp.eq.s32.totalorder %s19, 0
      %p186 = por %p184, %p185
      %p187 = scmp.ne.s32.totalorder %s179, %s181
      %p188 = scmp.eq.s32.totalorder %s24, 1
      %p189 = por %p187, %p188
      %p190 = scmp.ne.s32.totalorder %s181, %s182
      %p191 = scmp.eq.s32.totalorder %s24, 0
      %p192 = por %p190, %p191
      %p193 = scmp.ne.s32.totalorder %s181, %s182
      %p194 = scmp.eq.s32.totalorder %s25, 1
      %p195 = por %p193, %p194
      %p197 = scmp.ne.s32.totalorder %s182, %s196
      %p198 = scmp.eq.s32.totalorder %s25, 0
      %p199 = por %p197, %p198
      %s201 = sadd.s32 %s200, 1
      %p204 = scmp.eq.s32.totalorder %s19, 1
      %p205 = scmp.ne.s32.totalorder %s200, %s202
      %p206 = scmp.eq.s32.totalorder %s19, 0
      %p207 = por %p205, %p206
      %p208 = scmp.ne.s32.totalorder %s200, %s202
      %p209 = scmp.eq.s32.totalorder %s24, 1
      %p210 = por %p208, %p209
      %p211 = scmp.ne.s32.totalorder %s202, %s203
      %p212 = scmp.eq.s32.totalorder %s24, 0
      %p213 = por %p211, %p212
      %p214 = scmp.ne.s32.totalorder %s202, %s203
      %p215 = scmp.eq.s32.totalorder %s25, 1
      %p216 = por %p214, %p215
      %p218 = scmp.ne.s32.totalorder %s203, %s217
      %p219 = scmp.eq.s32.totalorder %s25, 0
      %p220 = por %p218, %p219
      %s222 = sadd.s32 %s221, 1
      %p225 = scmp.eq.s32.totalorder %s19, 1
      %p226 = scmp.ne.s32.totalorder %s221, %s223
      %p227 = scmp.eq.s32.totalorder %s19, 0
      %p228 = por %p226, %p227
      %p229 = scmp.ne.s32.totalorder %s221, %s223
      %p230 = scmp.eq.s32.totalorder %s24, 1
      %p231 = por %p229, %p230
      %p232 = scmp.ne.s32.totalorder %s223, %s224
      %p233 = scmp.eq.s32.totalorder %s24, 0
      %p234 = por %p232, %p233
      %p235 = scmp.ne.s32.totalorder %s223, %s224
      %p236 = scmp.eq.s32.totalorder %s25, 1
      %p237 = por %p235, %p236
      %p239 = scmp.ne.s32.totalorder %s224, %s238
      %p240 = scmp.eq.s32.totalorder %s25, 0
      %p241 = por %p239, %p240
      %s243 = sadd.s32 %s242, 1
      %p246 = scmp.eq.s32.totalorder %s19, 1
      %p247 = scmp.ne.s32.totalorder %s242, %s244
      %p248 = scmp.eq.s32.totalorder %s19, 0
      %p249 = por %p247, %p248
      %p250 = scmp.ne.s32.totalorder %s242, %s244
      %p251 = scmp.eq.s32.totalorder %s24, 1
      %p252 = por %p250, %p251
      %p253 = scmp.ne.s32.totalorder %s244, %s245
      %p254 = scmp.eq.s32.totalorder %s24, 0
      %p255 = por %p253, %p254
      %p256 = scmp.ne.s32.totalorder %s244, %s245
      %p257 = scmp.eq.s32.totalorder %s25, 1
      %p258 = por %p256, %p257
      %p260 = scmp.ne.s32.totalorder %s245, %s259
      %p261 = scmp.eq.s32.totalorder %s25, 0
      %p262 = por %p260, %p261
      %s263 = ssub.s32 %s19, %s26
      %p264 = scmp.eq.s32.totalorder %s263, 0
      %s266 = sadd.s32 %s265, 1
      %s267 = scalar_select %p264, %s265, %s266
      %p270 = pneg %p264
      %p271 = scmp.eq.s32.totalorder %s19, 1
      %p272 = por %p270, %p271
      %p273 = scmp.ne.s32.totalorder %s265, %s268
      %p274 = scmp.eq.s32.totalorder %s19, 0
      %p275 = por %p273, %p274
      %p276 = scmp.ne.s32.totalorder %s265, %s268
      %p277 = scmp.eq.s32.totalorder %s24, 1
      %p278 = por %p276, %p277
      %p279 = scmp.ne.s32.totalorder %s268, %s269
      %p280 = scmp.eq.s32.totalorder %s24, 0
      %p281 = por %p279, %p280
      %p282 = scmp.ne.s32.totalorder %s268, %s269
      %p283 = scmp.eq.s32.totalorder %s25, 1
      %p284 = por %p282, %p283
      %p286 = scmp.ne.s32.totalorder %s269, %s285
      %p287 = scmp.eq.s32.totalorder %s25, 0
      %p288 = por %p286, %p287
      %p289 = scmp.le.s32.totalorder 1, %s19
      %p290 = scmp.lt.s32.totalorder %s19, 3
      %p291 = pnand %p289, %p290
      %p292 = pneg %p291
      // Predicated region
      $region9: #{orbitnet_forward.1} parent=5 // pred_check
        _
      $region10: #{orbitnet_forward.1} parent=5 // pred_check_branch
        %294 = sbr.rel (%p291) target = $region12
      $region11: #{orbitnet_forward.1} parent=5 // pred_region
        %s295 = ssub.s32 %s19, 1
        // Predicated region
        $region13: #{orbitnet_forward.1} parent=11 // pred_check
          %p296 = pneg %p66
        $region14: #{orbitnet_forward.1} parent=11 // pred_check_branch
          %298 = sbr.rel (%p296) target = $region16
        $region15: #{orbitnet_forward.1} parent=11 // pred_region
          _
        $region16: #{orbitnet_forward.1} parent=11 // pred_fallthru
          _
        // Predicated region
        $region17: #{orbitnet_forward.1} parent=11 // pred_check
          %p299 = pneg %p87
        $region18: #{orbitnet_forward.1} parent=11 // pred_check_branch
          %301 = sbr.rel (%p299) target = $region20
        $region19: #{orbitnet_forward.1} parent=11 // pred_region
          _
        $region20: #{orbitnet_forward.1} parent=11 // pred_fallthru
          _
        // Predicated region
        $region21: #{orbitnet_forward.1} parent=11 // pred_check
          %p302 = pneg %p108
        $region22: #{orbitnet_forward.1} parent=11 // pred_check_branch
          %304 = sbr.rel (%p302) target = $region24
        $region23: #{orbitnet_forward.1} parent=11 // pred_region
          _
        $region24: #{orbitnet_forward.1} parent=11 // pred_fallthru
          _
        // Predicated region
        $region25: #{orbitnet_forward.1} parent=11 // pred_check
          %p305 = pneg %p129
        $region26: #{orbitnet_forward.1} parent=11 // pred_check_branch
          %307 = sbr.rel (%p305) target = $region28
        $region27: #{orbitnet_forward.1} parent=11 // pred_region
          _
        $region28: #{orbitnet_forward.1} parent=11 // pred_fallthru
          _
        // Predicated region
        $region29: #{orbitnet_forward.1} parent=11 // pred_check
          %p308 = pneg %p150
        $region30: #{orbitnet_forward.1} parent=11 // pred_check_branch
          %310 = sbr.rel (%p308) target = $region32
        $region31: #{orbitnet_forward.1} parent=11 // pred_region
          _
        $region32: #{orbitnet_forward.1} parent=11 // pred_fallthru
          _
        // Predicated region
        $region33: #{orbitnet_forward.1} parent=11 // pred_check
          %p311 = pneg %p171
        $region34: #{orbitnet_forward.1} parent=11 // pred_check_branch
          %313 = sbr.rel (%p311) target = $region36
        $region35: #{orbitnet_forward.1} parent=11 // pred_region
          _
        $region36: #{orbitnet_forward.1} parent=11 // pred_fallthru
          _
        // Predicated region
        $region37: #{orbitnet_forward.1} parent=11 // pred_check
          %p314 = pneg %p192
        $region38: #{orbitnet_forward.1} parent=11 // pred_check_branch
          %316 = sbr.rel (%p314) target = $region40
        $region39: #{orbitnet_forward.1} parent=11 // pred_region
          %s318 = ssub.s32 2048, 2048
          %319 = vsyncadd [#allocation3], %s318
          %s320 = sshll.u32 [#allocation2], 4
          %s321 = int_to_ptr.vmem [resolvable:$true] %s320
          %326 = dma.hbm_to_vmem [thread:$0]  %s7, 2048, %s321, [#allocation3], 128, 128, 8
        $region40: #{orbitnet_forward.1} parent=11 // pred_fallthru
          _
        // Predicated region
        $region41: #{orbitnet_forward.1} parent=11 // pred_check
          %p327 = pneg %p213
        $region42: #{orbitnet_forward.1} parent=11 // pred_check_branch
          %329 = sbr.rel (%p327) target = $region44
        $region43: #{orbitnet_forward.1} parent=11 // pred_region
          _
        $region44: #{orbitnet_forward.1} parent=11 // pred_fallthru
          _
        // Predicated region
        $region45: #{orbitnet_forward.1} parent=11 // pred_check
          %p330 = pneg %p234
        $region46: #{orbitnet_forward.1} parent=11 // pred_check_branch
          %332 = sbr.rel (%p330) target = $region48
        $region47: #{orbitnet_forward.1} parent=11 // pred_region
          %s334 = ssub.s32 2048, 2048
          %335 = vsyncadd [#allocation5], %s334
          %s336 = sshll.u32 [#allocation4], 4
          %s337 = int_to_ptr.vmem [resolvable:$true] %s336
          %342 = dma.hbm_to_vmem [thread:$0]  %s9, 2048, %s337, [#allocation5], 128, 128, 8
        $region48: #{orbitnet_forward.1} parent=11 // pred_fallthru
          _
        // Predicated region
        $region49: #{orbitnet_forward.1} parent=11 // pred_check
          %p343 = pneg %p255
        $region50: #{orbitnet_forward.1} parent=11 // pred_check_branch
          %345 = sbr.rel (%p343) target = $region52
        $region51: #{orbitnet_forward.1} parent=11 // pred_region
          _
        $region52: #{orbitnet_forward.1} parent=11 // pred_fallthru
          _
      $region12: #{orbitnet_forward.1} parent=5 // pred_fallthru
        _
      %p346 = scmp.lt.s32.totalorder %s19, 2
      // Predicated region
      $region53: #{orbitnet_forward.1} parent=5 // pred_check
        %p347 = pneg %p346
      $region54: #{orbitnet_forward.1} parent=5 // pred_check_branch
        %349 = sbr.rel (%p347) target = $region56
      $region55: #{orbitnet_forward.1} parent=5 // pred_region
        // Predicated region
        $region57: #{orbitnet_forward.1} parent=55 // pred_check
          %p350 = pneg %p39
        $region58: #{orbitnet_forward.1} parent=55 // pred_check_branch
          %352 = sbr.rel (%p350) target = $region60
        $region59: #{orbitnet_forward.1} parent=55 // pred_region
          %s353 = smul.u32 16, %s19
          %p354 = scmp.lt.s32.totalorder %s353, 31
          %s355 = scalar_select %p354, %s353, 31
          %s356 = smul.addr %s355, 8
          %s357 = scalar_lea.vmem %s0, %s356
          %s358 = smul.u32 16, %s19
        $region60: #{orbitnet_forward.1} parent=55 // pred_fallthru
          _
      $region56: #{orbitnet_forward.1} parent=5 // pred_fallthru
        _
      %p359 = scmp.le.s32.totalorder 1, %s19
      %p360 = scmp.lt.s32.totalorder %s19, 3
      %p361 = pnand %p359, %p360
      %p362 = pneg %p361
      // Predicated region
      $region61: #{orbitnet_forward.1} parent=5 // pred_check
        _
      $region62: #{orbitnet_forward.1} parent=5 // pred_check_branch
        %364 = sbr.rel (%p361) target = $region64
      $region63: #{orbitnet_forward.1} parent=5 // pred_region
        %s365 = ssub.s32 %s19, 1
        // Predicated region
        $region65: #{orbitnet_forward.1} parent=63 // pred_check
          %p366 = pneg %p192
        $region66: #{orbitnet_forward.1} parent=63 // pred_check_branch
          %368 = sbr.rel (%p366) target = $region68
        $region67: #{orbitnet_forward.1} parent=63 // pred_region
          %369 = dma.done [#allocation3], 2048
        $region68: #{orbitnet_forward.1} parent=63 // pred_fallthru
          _
        // Predicated region
        $region69: #{orbitnet_forward.1} parent=63 // pred_check
          %p370 = pneg %p234
        $region70: #{orbitnet_forward.1} parent=63 // pred_check_branch
          %372 = sbr.rel (%p370) target = $region72
        $region71: #{orbitnet_forward.1} parent=63 // pred_region
          %373 = dma.done [#allocation5], 2048
        $region72: #{orbitnet_forward.1} parent=63 // pred_fallthru
          _
        %s374 = smul.u32 16, %s24
        %p375 = scmp.lt.s32.totalorder %s374, 31
        %s376 = scalar_select %p375, %s374, 31
        %s377 = smul.addr %s376, 8
        %s378 = scalar_lea.vmem %s0, %s377
        %p379 = pneg %p45
        %p380 = pneg %p42
        %p381 = pneg %p66
        %p382 = pneg %p63
        %p383 = pneg %p87
        %p384 = pneg %p84
        %p385 = pneg %p108
        %p386 = pneg %p105
        %p387 = pneg %p129
        %p388 = pneg %p126
        %p389 = pneg %p150
        %p390 = pneg %p147
        %p391 = pneg %p171
        %p392 = pneg %p168
        %p393 = pneg %p192
        %p394 = pneg %p189
        %p395 = pneg %p213
        %p396 = pneg %p210
        %p397 = pneg %p234
        %p398 = pneg %p231
        %p399 = pneg %p255
        %p400 = pneg %p252
        %p401 = pneg %p281
        %p402 = pneg %p278
        %s403 = smul.u32 16, %s24
        %p404 = scmp.lt.s32.totalorder %s403, 31
        %s405 = scalar_select %p404, %s403, 31
        %s406 = smul.addr %s405, 8
        %s407 = scalar_lea.vmem %s11, %s406
        %s408 = smul.u32 16, %s24
        %p409 = scmp.lt.s32.totalorder %s408, 31
        %s410 = scalar_select %p409, %s408, 31
        %s411 = smul.addr %s410, 8
        %s412 = scalar_lea.vmem %s0, %s411
        %s413 = smul.u32 16, %s24
        %s414 = smul.u32 16, %s24
        %p415 = scmp.lt.s32.totalorder %s414, 31
        %s416 = scalar_select %p415, %s414, 31
        %s417 = smul.addr %s416, 8
        %s418 = scalar_lea.vmem %s11, %s417
        %s419 = smul.u32 16, %s24
        %v420 = vld [vmem:[%s412] sm:$0xff]
        %v421 = vld [vmem:[%s412 + $0x8] sm:$0xff]
        %v422 = vld [vmem:[%s412 + $0x10] sm:$0xff]
        %v423 = vld [vmem:[%s412 + $0x18] sm:$0xff]
        %v424 = vld [vmem:[%s412 + $0x20] sm:$0xff]
        %v425 = vld [vmem:[%s412 + $0x28] sm:$0xff]
        %v426 = vld [vmem:[%s412 + $0x30] sm:$0xff]
        %v427 = vld [vmem:[%s412 + $0x38] sm:$0xff]
        %v428 = vld [vmem:[%s412 + $0x40] sm:$0xff]
        %v429 = vld [vmem:[%s412 + $0x48] sm:$0xff]
        %v430 = vld [vmem:[%s412 + $0x50] sm:$0xff]
        %v431 = vld [vmem:[%s412 + $0x58] sm:$0xff]
        %v432 = vld [vmem:[%s412 + $0x60] sm:$0xff]
        %v433 = vld [vmem:[%s412 + $0x68] sm:$0xff]
        %v434 = vld [vmem:[%s412 + $0x70] sm:$0xff]
        %v435 = vld [vmem:[%s412 + $0x78] sm:$0xff]
        %v436 = vld [vmem:[%s1] sm:$0x1]
        %438 = vset.pattern.permute.xlu0 0
        %439 = vperm.xlu0 %438, %v420
        %v440 = vpop.permute.xlu0 %439
        %443 = vset.pattern.permute.xlu0 0
        %444 = vperm.xlu0 %443, %v421
        %v445 = vpop.permute.xlu0 %444
        %448 = vset.pattern.permute.xlu0 0
        %449 = vperm.xlu0 %448, %v422
        %v450 = vpop.permute.xlu0 %449
        %453 = vset.pattern.permute.xlu0 0
        %454 = vperm.xlu0 %453, %v423
        %v455 = vpop.permute.xlu0 %454
        %458 = vset.pattern.permute.xlu0 0
        %459 = vperm.xlu0 %458, %v424
        %v460 = vpop.permute.xlu0 %459
        %463 = vset.pattern.permute.xlu0 0
        %464 = vperm.xlu0 %463, %v425
        %v465 = vpop.permute.xlu0 %464
        %468 = vset.pattern.permute.xlu0 0
        %469 = vperm.xlu0 %468, %v426
        %v470 = vpop.permute.xlu0 %469
        %473 = vset.pattern.permute.xlu0 0
        %474 = vperm.xlu0 %473, %v427
        %v475 = vpop.permute.xlu0 %474
        %478 = vset.pattern.permute.xlu0 0
        %479 = vperm.xlu0 %478, %v428
        %v480 = vpop.permute.xlu0 %479
        %483 = vset.pattern.permute.xlu0 0
        %484 = vperm.xlu0 %483, %v429
        %v485 = vpop.permute.xlu0 %484
        %488 = vset.pattern.permute.xlu0 0
        %489 = vperm.xlu0 %488, %v430
        %v490 = vpop.permute.xlu0 %489
        %493 = vset.pattern.permute.xlu0 0
        %494 = vperm.xlu0 %493, %v431
        %v495 = vpop.permute.xlu0 %494
        %498 = vset.pattern.permute.xlu0 0
        %499 = vperm.xlu0 %498, %v432
        %v500 = vpop.permute.xlu0 %499
        %503 = vset.pattern.permute.xlu0 0
        %504 = vperm.xlu0 %503, %v433
        %v505 = vpop.permute.xlu0 %504
        %508 = vset.pattern.permute.xlu0 0
        %509 = vperm.xlu0 %508, %v434
        %v510 = vpop.permute.xlu0 %509
        %513 = vset.pattern.permute.xlu0 0
        %514 = vperm.xlu0 %513, %v435
        %v515 = vpop.permute.xlu0 %514
        %v518 = vlaneseq
        %v519 = vshrl.u32 %v518, 7
        %v520 = vsub.s32 0, %v519
        %v521 = vrot.slane %v436, %v520
        %v523 = vmul.f32 %v440, %v521
        %v524 = vmul.f32 %v445, %v521
        %v525 = vmul.f32 %v450, %v521
        %v526 = vmul.f32 %v455, %v521
        %v527 = vmul.f32 %v460, %v521
        %v528 = vmul.f32 %v465, %v521
        %v529 = vmul.f32 %v470, %v521
        %v530 = vmul.f32 %v475, %v521
        %v531 = vmul.f32 %v480, %v521
        %v532 = vmul.f32 %v485, %v521
        %v533 = vmul.f32 %v490, %v521
        %v534 = vmul.f32 %v495, %v521
        %v535 = vmul.f32 %v500, %v521
        %v536 = vmul.f32 %v505, %v521
        %v537 = vmul.f32 %v510, %v521
        %v538 = vmul.f32 %v515, %v521
        %v539 = vld [vmem:[%s2] sm:$0x1]
        %v541 = vlaneseq
        %v542 = vshrl.u32 %v541, 7
        %v543 = vsub.s32 0, %v542
        %v544 = vrot.slane %v539, %v543
        %v546 = vadd.f32 %v523, %v544
        %v547 = vadd.f32 %v524, %v544
        %v548 = vadd.f32 %v525, %v544
        %v549 = vadd.f32 %v526, %v544
        %v550 = vadd.f32 %v527, %v544
        %v551 = vadd.f32 %v528, %v544
        %v552 = vadd.f32 %v529, %v544
        %v553 = vadd.f32 %v530, %v544
        %v554 = vadd.f32 %v531, %v544
        %v555 = vadd.f32 %v532, %v544
        %v556 = vadd.f32 %v533, %v544
        %v557 = vadd.f32 %v534, %v544
        %v558 = vadd.f32 %v535, %v544
        %v559 = vadd.f32 %v536, %v544
        %v560 = vadd.f32 %v537, %v544
        %v561 = vadd.f32 %v538, %v544
        %v562 = vmax.f32 %v546, 0.0
        %v563 = vmax.f32 %v547, 0.0
        %v564 = vmax.f32 %v548, 0.0
        %v565 = vmax.f32 %v549, 0.0
        %v566 = vmax.f32 %v550, 0.0
        %v567 = vmax.f32 %v551, 0.0
        %v568 = vmax.f32 %v552, 0.0
        %v569 = vmax.f32 %v553, 0.0
        %v570 = vmax.f32 %v554, 0.0
        %v571 = vmax.f32 %v555, 0.0
        %v572 = vmax.f32 %v556, 0.0
        %v573 = vmax.f32 %v557, 0.0
        %v574 = vmax.f32 %v558, 0.0
        %v575 = vmax.f32 %v559, 0.0
        %v576 = vmax.f32 %v560, 0.0
        %v577 = vmax.f32 %v561, 0.0
        %v578 = vld [vmem:[%s3] sm:$0xff]
        %v579 = vld [vmem:[%s3 + $0x8] sm:$0xff]
        %v580 = vld [vmem:[%s3 + $0x10] sm:$0xff]
        %v581 = vld [vmem:[%s3 + $0x18] sm:$0xff]
        %v582 = vld [vmem:[%s3 + $0x20] sm:$0xff]
        %v583 = vld [vmem:[%s3 + $0x28] sm:$0xff]
        %v584 = vld [vmem:[%s3 + $0x30] sm:$0xff]
        %v585 = vld [vmem:[%s3 + $0x38] sm:$0xff]
        %v586 = vld [vmem:[%s3 + $0x40] sm:$0xff]
        %v587 = vld [vmem:[%s3 + $0x48] sm:$0xff]
        %v588 = vld [vmem:[%s3 + $0x50] sm:$0xff]
        %v589 = vld [vmem:[%s3 + $0x58] sm:$0xff]
        %v590 = vld [vmem:[%s3 + $0x60] sm:$0xff]
        %v591 = vld [vmem:[%s3 + $0x68] sm:$0xff]
        %v592 = vld [vmem:[%s3 + $0x70] sm:$0xff]
        %v593 = vld [vmem:[%s3 + $0x78] sm:$0xff]
        %v594 = vld [vmem:[%s4] sm:$0x1]
        %v596 = vlaneseq
        %v597 = vshrl.u32 %v596, 7
        %v598 = vsub.s32 0, %v597
        %v599 = vrot.slane %v594, %v598
        %601 = vmatprep.subr.mxu0 0.0
        %602 = vmatpush1.msra.mxu0 %v578
        %603 = vmatprep.subr.mxu0 0.0
        %604 = vmatpush1.msra.mxu0 %v579
        %605 = vmatprep.subr.mxu0 0.0
        %606 = vmatpush1.msra.mxu0 %v580
        %607 = vmatprep.subr.mxu0 0.0
        %608 = vmatpush1.msra.mxu0 %v581
        %609 = vmatprep.subr.mxu0 0.0
        %610 = vmatpush1.msra.mxu0 %v582
        %611 = vmatprep.subr.mxu0 0.0
        %612 = vmatpush1.msra.mxu0 %v583
        %613 = vmatprep.subr.mxu0 0.0
        %614 = vmatpush1.msra.mxu0 %v584
        %615 = vmatprep.subr.mxu0 0.0
        %616 = vmatpush1.msra.mxu0 %v585
        %617 = vmatprep.subr.mxu0 0.0
        %618 = vmatpush1.msra.mxu0 %v586
        %619 = vmatprep.subr.mxu0 0.0
        %620 = vmatpush1.msra.mxu0 %v587
        %621 = vmatprep.subr.mxu0 0.0
        %622 = vmatpush1.msra.mxu0 %v588
        %623 = vmatprep.subr.mxu0 0.0
        %624 = vmatpush1.msra.mxu0 %v589
        %625 = vmatprep.subr.mxu0 0.0
        %626 = vmatpush1.msra.mxu0 %v590
        %627 = vmatprep.subr.mxu0 0.0
        %628 = vmatpush1.msra.mxu0 %v591
        %629 = vmatprep.subr.mxu0 0.0
        %630 = vmatpush1.msra.mxu0 %v592
        %631 = vmatprep.subr.mxu0 0.0
        %632 = vmatpush1.msra.mxu0 %v593
        %633 = vmatprep.subr.mxu0 0.0
        %634 = vmatpush1.msra.mxu0 0.0
        %635 = vmatprep.subr.mxu0 0.0
        %636 = vmatpush1.msra.mxu0 0.0
        %637 = vmatprep.subr.mxu0 0.0
        %638 = vmatpush1.msra.mxu0 0.0
        %639 = vmatprep.subr.mxu0 0.0
        %640 = vmatpush1.msra.mxu0 0.0
        %641 = vmatprep.subr.mxu0 0.0
        %642 = vmatpush1.msra.mxu0 0.0
        %643 = vmatprep.subr.mxu0 0.0
        %644 = vmatpush1.msra.mxu0 0.0
        %645 = vmatprep.subr.mxu0 0.0
        %646 = vmatpush1.msra.mxu0 0.0
        %647 = vmatprep.subr.mxu0 0.0
        %648 = vmatpush1.msra.mxu0 0.0
        %649 = vmatprep.subr.mxu0 0.0
        %650 = vmatpush1.msra.mxu0 0.0
        %651 = vmatprep.subr.mxu0 0.0
        %652 = vmatpush1.msra.mxu0 0.0
        %653 = vmatprep.subr.mxu0 0.0
        %654 = vmatpush1.msra.mxu0 0.0
        %655 = vmatprep.subr.mxu0 0.0
        %656 = vmatpush1.msra.mxu0 0.0
        %657 = vmatprep.subr.mxu0 0.0
        %658 = vmatpush1.msra.mxu0 0.0
        %659 = vmatprep.subr.mxu0 0.0
        %660 = vmatpush1.msra.mxu0 0.0
        %661 = vmatprep.subr.mxu0 0.0
        %662 = vmatpush1.msra.mxu0 0.0
        %663 = vmatprep.subr.mxu0 0.0
        %664 = vmatpush1.msra.mxu0 0.0
        %665 = vmatprep.mubr.f32.mxu0 0.0
        %666 = vmatmul.mubr.f32.gmra.mrb[0].mxu0 %v562
        %v667 = vpop.f32.mrb[0].mxu0
        %v668 = vadd.f32 %v599, %v667
        %v669 = vpop.f32.mrb[0].mxu0
        %670 = vmatprep.mubr.f32.mxu0 0.0
        %671 = vmatmul.mubr.f32.gmra.mrb[0].mxu0 %v563
        %v672 = vpop.f32.mrb[0].mxu0
        %v673 = vadd.f32 %v599, %v672
        %v674 = vpop.f32.mrb[0].mxu0
        %675 = vmatprep.mubr.f32.mxu0 0.0
        %676 = vmatmul.mubr.f32.gmra.mrb[0].mxu0 %v564
        %v677 = vpop.f32.mrb[0].mxu0
        %v678 = vadd.f32 %v599, %v677
        %v679 = vpop.f32.mrb[0].mxu0
        %680 = vmatprep.mubr.f32.mxu0 0.0
        %681 = vmatmul.mubr.f32.gmra.mrb[0].mxu0 %v565
        %v682 = vpop.f32.mrb[0].mxu0
        %v683 = vadd.f32 %v599, %v682
        %v684 = vpop.f32.mrb[0].mxu0
        %685 = vmatprep.mubr.f32.mxu0 0.0
        %686 = vmatmul.mubr.f32.gmra.mrb[0].mxu0 %v566
        %v687 = vpop.f32.mrb[0].mxu0
        %v688 = vadd.f32 %v599, %v687
        %v689 = vpop.f32.mrb[0].mxu0
        %690 = vmatprep.mubr.f32.mxu0 0.0
        %691 = vmatmul.mubr.f32.gmra.mrb[0].mxu0 %v567
        %v692 = vpop.f32.mrb[0].mxu0
        %v693 = vadd.f32 %v599, %v692
        %v694 = vpop.f32.mrb[0].mxu0
        %695 = vmatprep.mubr.f32.mxu0 0.0
        %696 = vmatmul.mubr.f32.gmra.mrb[0].mxu0 %v568
        %v697 = vpop.f32.mrb[0].mxu0
        %v698 = vadd.f32 %v599, %v697
        %v699 = vpop.f32.mrb[0].mxu0
        %700 = vmatprep.mubr.f32.mxu0 0.0
        %701 = vmatmul.mubr.f32.gmra.mrb[0].mxu0 %v569
        %v702 = vpop.f32.mrb[0].mxu0
        %v703 = vadd.f32 %v599, %v702
        %v704 = vpop.f32.mrb[0].mxu0
        %705 = vmatprep.mubr.f32.mxu0 0.0
        %706 = vmatmul.mubr.f32.gmra.mrb[0].mxu0 %v570
        %v707 = vpop.f32.mrb[0].mxu0
        %v708 = vadd.f32 %v599, %v707
        %v709 = vpop.f32.mrb[0].mxu0
        %710 = vmatprep.mubr.f32.mxu0 0.0
        %711 = vmatmul.mubr.f32.gmra.mrb[0].mxu0 %v571
        %v712 = vpop.f32.mrb[0].mxu0
        %v713 = vadd.f32 %v599, %v712
        %v714 = vpop.f32.mrb[0].mxu0
        %715 = vmatprep.mubr.f32.mxu0 0.0
        %716 = vmatmul.mubr.f32.gmra.mrb[0].mxu0 %v572
        %v717 = vpop.f32.mrb[0].mxu0
        %v718 = vadd.f32 %v599, %v717
        %v719 = vpop.f32.mrb[0].mxu0
        %720 = vmatprep.mubr.f32.mxu0 0.0
        %721 = vmatmul.mubr.f32.gmra.mrb[0].mxu0 %v573
        %v722 = vpop.f32.mrb[0].mxu0
        %v723 = vadd.f32 %v599, %v722
        %v724 = vpop.f32.mrb[0].mxu0
        %725 = vmatprep.mubr.f32.mxu0 0.0
        %726 = vmatmul.mubr.f32.gmra.mrb[0].mxu0 %v574
        %v727 = vpop.f32.mrb[0].mxu0
        %v728 = vadd.f32 %v599, %v727
        %v729 = vpop.f32.mrb[0].mxu0
        %730 = vmatprep.mubr.f32.mxu0 0.0
        %731 = vmatmul.mubr.f32.gmra.mrb[0].mxu0 %v575
        %v732 = vpop.f32.mrb[0].mxu0
        %v733 = vadd.f32 %v599, %v732
        %v734 = vpop.f32.mrb[0].mxu0
        %735 = vmatprep.mubr.f32.mxu0 0.0
        %736 = vmatmul.mubr.f32.gmra.mrb[0].mxu0 %v576
        %v737 = vpop.f32.mrb[0].mxu0
        %v738 = vadd.f32 %v599, %v737
        %v739 = vpop.f32.mrb[0].mxu0
        %740 = vmatprep.mubr.f32.mxu0 0.0
        %741 = vmatmul.mubr.f32.gmra.mrb[0].mxu0 %v577
        %v742 = vpop.f32.mrb[0].mxu0
        %v743 = vadd.f32 %v599, %v742
        %v744 = vpop.f32.mrb[0].mxu0
        %745 = vdwg.mxu0
        %v746 = vmax.f32 %v668, 0.0
        %v747 = vmax.f32 %v673, 0.0
        %v748 = vmax.f32 %v678, 0.0
        %v749 = vmax.f32 %v683, 0.0
        %v750 = vmax.f32 %v688, 0.0
        %v751 = vmax.f32 %v693, 0.0
        %v752 = vmax.f32 %v698, 0.0
        %v753 = vmax.f32 %v703, 0.0
        %v754 = vmax.f32 %v708, 0.0
        %v755 = vmax.f32 %v713, 0.0
        %v756 = vmax.f32 %v718, 0.0
        %v757 = vmax.f32 %v723, 0.0
        %v758 = vmax.f32 %v728, 0.0
        %v759 = vmax.f32 %v733, 0.0
        %v760 = vmax.f32 %v738, 0.0
        %v761 = vmax.f32 %v743, 0.0
        %v762 = vld [vmem:[%s5] sm:$0xff]
        %v763 = vld [vmem:[%s5 + $0x8] sm:$0xff]
        %v764 = vld [vmem:[%s5 + $0x10] sm:$0xff]
        %v765 = vld [vmem:[%s5 + $0x18] sm:$0xff]
        %v766 = vld [vmem:[%s5 + $0x20] sm:$0xff]
        %v767 = vld [vmem:[%s5 + $0x28] sm:$0xff]
        %v768 = vld [vmem:[%s5 + $0x30] sm:$0xff]
        %v769 = vld [vmem:[%s5 + $0x38] sm:$0xff]
        %v770 = vld [vmem:[%s5 + $0x40] sm:$0xff]
        %v771 = vld [vmem:[%s5 + $0x48] sm:$0xff]
        %v772 = vld [vmem:[%s5 + $0x50] sm:$0xff]
        %v773 = vld [vmem:[%s5 + $0x58] sm:$0xff]
        %v774 = vld [vmem:[%s5 + $0x60] sm:$0xff]
        %v775 = vld [vmem:[%s5 + $0x68] sm:$0xff]
        %v776 = vld [vmem:[%s5 + $0x70] sm:$0xff]
        %v777 = vld [vmem:[%s5 + $0x78] sm:$0xff]
        %v778 = vld [vmem:[%s6] sm:$0x1]
        %v780 = vlaneseq
        %v781 = vshrl.u32 %v780, 7
        %v782 = vsub.s32 0, %v781
        %v783 = vrot.slane %v778, %v782
        %785 = vmatprep.subr.mxu0 0.0
        %786 = vmatpush1.msra.mxu0 %v762
        %787 = vmatprep.subr.mxu0 0.0
        %788 = vmatpush1.msra.mxu0 %v763
        %789 = vmatprep.subr.mxu0 0.0
        %790 = vmatpush1.msra.mxu0 %v764
        %791 = vmatprep.subr.mxu0 0.0
        %792 = vmatpush1.msra.mxu0 %v765
        %793 = vmatprep.subr.mxu0 0.0
        %794 = vmatpush1.msra.mxu0 %v766
        %795 = vmatprep.subr.mxu0 0.0
        %796 = vmatpush1.msra.mxu0 %v767
        %797 = vmatprep.subr.mxu0 0.0
        %798 = vmatpush1.msra.mxu0 %v768
        %799 = vmatprep.subr.mxu0 0.0
        %800 = vmatpush1.msra.mxu0 %v769
        %801 = vmatprep.subr.mxu0 0.0
        %802 = vmatpush1.msra.mxu0 %v770
        %803 = vmatprep.subr.mxu0 0.0
        %804 = vmatpush1.msra.mxu0 %v771
        %805 = vmatprep.subr.mxu0 0.0
        %806 = vmatpush1.msra.mxu0 %v772
        %807 = vmatprep.subr.mxu0 0.0
        %808 = vmatpush1.msra.mxu0 %v773
        %809 = vmatprep.subr.mxu0 0.0
        %810 = vmatpush1.msra.mxu0 %v774
        %811 = vmatprep.subr.mxu0 0.0
        %812 = vmatpush1.msra.mxu0 %v775
        %813 = vmatprep.subr.mxu0 0.0
        %814 = vmatpush1.msra.mxu0 %v776
        %815 = vmatprep.subr.mxu0 0.0
        %816 = vmatpush1.msra.mxu0 %v777
        %817 = vmatprep.subr.mxu0 0.0
        %818 = vmatpush1.msra.mxu0 0.0
        %819 = vmatprep.subr.mxu0 0.0
        %820 = vmatpush1.msra.mxu0 0.0
        %821 = vmatprep.subr.mxu0 0.0
        %822 = vmatpush1.msra.mxu0 0.0
        %823 = vmatprep.subr.mxu0 0.0
        %824 = vmatpush1.msra.mxu0 0.0
        %825 = vmatprep.subr.mxu0 0.0
        %826 = vmatpush1.msra.mxu0 0.0
        %827 = vmatprep.subr.mxu0 0.0
        %828 = vmatpush1.msra.mxu0 0.0
        %829 = vmatprep.subr.mxu0 0.0
        %830 = vmatpush1.msra.mxu0 0.0
        %831 = vmatprep.subr.mxu0 0.0
        %832 = vmatpush1.msra.mxu0 0.0
        %833 = vmatprep.subr.mxu0 0.0
        %834 = vmatpush1.msra.mxu0 0.0
        %835 = vmatprep.subr.mxu0 0.0
        %836 = vmatpush1.msra.mxu0 0.0
        %837 = vmatprep.subr.mxu0 0.0
        %838 = vmatpush1.msra.mxu0 0.0
        %839 = vmatprep.subr.mxu0 0.0
        %840 = vmatpush1.msra.mxu0 0.0
        %841 = vmatprep.subr.mxu0 0.0
        %842 = vmatpush1.msra.mxu0 0.0
        %843 = vmatprep.subr.mxu0 0.0
        %844 = vmatpush1.msra.mxu0 0.0
        %845 = vmatprep.subr.mxu0 0.0
        %846 = vmatpush1.msra.mxu0 0.0
        %847 = vmatprep.subr.mxu0 0.0
        %848 = vmatpush1.msra.mxu0 0.0
        %849 = vmatprep.mubr.f32.mxu0 0.0
        %850 = vmatmul.mubr.f32.gmra.mrb[0].mxu0 %v746
        %v851 = vpop.f32.mrb[0].mxu0
        %v852 = vadd.f32 %v783, %v851
        %v853 = vpop.f32.mrb[0].mxu0
        %854 = vmatprep.mubr.f32.mxu0 0.0
        %855 = vmatmul.mubr.f32.gmra.mrb[0].mxu0 %v747
        %v856 = vpop.f32.mrb[0].mxu0
        %v857 = vadd.f32 %v783, %v856
        %v858 = vpop.f32.mrb[0].mxu0
        %859 = vmatprep.mubr.f32.mxu0 0.0
        %860 = vmatmul.mubr.f32.gmra.mrb[0].mxu0 %v748
        %v861 = vpop.f32.mrb[0].mxu0
        %v862 = vadd.f32 %v783, %v861
        %v863 = vpop.f32.mrb[0].mxu0
        %864 = vmatprep.mubr.f32.mxu0 0.0
        %865 = vmatmul.mubr.f32.gmra.mrb[0].mxu0 %v749
        %v866 = vpop.f32.mrb[0].mxu0
        %v867 = vadd.f32 %v783, %v866
        %v868 = vpop.f32.mrb[0].mxu0
        %869 = vmatprep.mubr.f32.mxu0 0.0
        %870 = vmatmul.mubr.f32.gmra.mrb[0].mxu0 %v750
        %v871 = vpop.f32.mrb[0].mxu0
        %v872 = vadd.f32 %v783, %v871
        %v873 = vpop.f32.mrb[0].mxu0
        %874 = vmatprep.mubr.f32.mxu0 0.0
        %875 = vmatmul.mubr.f32.gmra.mrb[0].mxu0 %v751
        %v876 = vpop.f32.mrb[0].mxu0
        %v877 = vadd.f32 %v783, %v876
        %v878 = vpop.f32.mrb[0].mxu0
        %879 = vmatprep.mubr.f32.mxu0 0.0
        %880 = vmatmul.mubr.f32.gmra.mrb[0].mxu0 %v752
        %v881 = vpop.f32.mrb[0].mxu0
        %v882 = vadd.f32 %v783, %v881
        %v883 = vpop.f32.mrb[0].mxu0
        %884 = vmatprep.mubr.f32.mxu0 0.0
        %885 = vmatmul.mubr.f32.gmra.mrb[0].mxu0 %v753
        %v886 = vpop.f32.mrb[0].mxu0
        %v887 = vadd.f32 %v783, %v886
        %v888 = vpop.f32.mrb[0].mxu0
        %889 = vmatprep.mubr.f32.mxu0 0.0
        %890 = vmatmul.mubr.f32.gmra.mrb[0].mxu0 %v754
        %v891 = vpop.f32.mrb[0].mxu0
        %v892 = vadd.f32 %v783, %v891
        %v893 = vpop.f32.mrb[0].mxu0
        %894 = vmatprep.mubr.f32.mxu0 0.0
        %895 = vmatmul.mubr.f32.gmra.mrb[0].mxu0 %v755
        %v896 = vpop.f32.mrb[0].mxu0
        %v897 = vadd.f32 %v783, %v896
        %v898 = vpop.f32.mrb[0].mxu0
        %899 = vmatprep.mubr.f32.mxu0 0.0
        %900 = vmatmul.mubr.f32.gmra.mrb[0].mxu0 %v756
        %v901 = vpop.f32.mrb[0].mxu0
        %v902 = vadd.f32 %v783, %v901
        %v903 = vpop.f32.mrb[0].mxu0
        %904 = vmatprep.mubr.f32.mxu0 0.0
        %905 = vmatmul.mubr.f32.gmra.mrb[0].mxu0 %v757
        %v906 = vpop.f32.mrb[0].mxu0
        %v907 = vadd.f32 %v783, %v906
        %v908 = vpop.f32.mrb[0].mxu0
        %909 = vmatprep.mubr.f32.mxu0 0.0
        %910 = vmatmul.mubr.f32.gmra.mrb[0].mxu0 %v758
        %v911 = vpop.f32.mrb[0].mxu0
        %v912 = vadd.f32 %v783, %v911
        %v913 = vpop.f32.mrb[0].mxu0
        %914 = vmatprep.mubr.f32.mxu0 0.0
        %915 = vmatmul.mubr.f32.gmra.mrb[0].mxu0 %v759
        %v916 = vpop.f32.mrb[0].mxu0
        %v917 = vadd.f32 %v783, %v916
        %v918 = vpop.f32.mrb[0].mxu0
        %919 = vmatprep.mubr.f32.mxu0 0.0
        %920 = vmatmul.mubr.f32.gmra.mrb[0].mxu0 %v760
        %v921 = vpop.f32.mrb[0].mxu0
        %v922 = vadd.f32 %v783, %v921
        %v923 = vpop.f32.mrb[0].mxu0
        %924 = vmatprep.mubr.f32.mxu0 0.0
        %925 = vmatmul.mubr.f32.gmra.mrb[0].mxu0 %v761
        %v926 = vpop.f32.mrb[0].mxu0
        %v927 = vadd.f32 %v783, %v926
        %v928 = vpop.f32.mrb[0].mxu0
        %929 = vdwg.mxu0
        %v930 = vmax.f32 %v852, 0.0
        %v931 = vmax.f32 %v857, 0.0
        %v932 = vmax.f32 %v862, 0.0
        %v933 = vmax.f32 %v867, 0.0
        %v934 = vmax.f32 %v872, 0.0
        %v935 = vmax.f32 %v877, 0.0
        %v936 = vmax.f32 %v882, 0.0
        %v937 = vmax.f32 %v887, 0.0
        %v938 = vmax.f32 %v892, 0.0
        %v939 = vmax.f32 %v897, 0.0
        %v940 = vmax.f32 %v902, 0.0
        %v941 = vmax.f32 %v907, 0.0
        %v942 = vmax.f32 %v912, 0.0
        %v943 = vmax.f32 %v917, 0.0
        %v944 = vmax.f32 %v922, 0.0
        %v945 = vmax.f32 %v927, 0.0
        %v946 = vld [vmem:[#allocation2] sm:$0xff]
        %v947 = vld [vmem:[#allocation2 + $0x8] sm:$0xff]
        %v948 = vld [vmem:[#allocation2 + $0x10] sm:$0xff]
        %v949 = vld [vmem:[#allocation2 + $0x18] sm:$0xff]
        %v950 = vld [vmem:[#allocation2 + $0x20] sm:$0xff]
        %v951 = vld [vmem:[#allocation2 + $0x28] sm:$0xff]
        %v952 = vld [vmem:[#allocation2 + $0x30] sm:$0xff]
        %v953 = vld [vmem:[#allocation2 + $0x38] sm:$0xff]
        %v954 = vld [vmem:[#allocation2 + $0x40] sm:$0xff]
        %v955 = vld [vmem:[#allocation2 + $0x48] sm:$0xff]
        %v956 = vld [vmem:[#allocation2 + $0x50] sm:$0xff]
        %v957 = vld [vmem:[#allocation2 + $0x58] sm:$0xff]
        %v958 = vld [vmem:[#allocation2 + $0x60] sm:$0xff]
        %v959 = vld [vmem:[#allocation2 + $0x68] sm:$0xff]
        %v960 = vld [vmem:[#allocation2 + $0x70] sm:$0xff]
        %v961 = vld [vmem:[#allocation2 + $0x78] sm:$0xff]
        %v962 = vld [vmem:[%s8] sm:$0x1]
        %v964 = vlaneseq
        %v965 = vshrl.u32 %v964, 7
        %v966 = vsub.s32 0, %v965
        %v967 = vrot.slane %v962, %v966
        %969 = vmatprep.subr.mxu0 0.0
        %970 = vmatpush1.msra.mxu0 %v946
        %971 = vmatprep.subr.mxu0 0.0
        %972 = vmatpush1.msra.mxu0 %v947
        %973 = vmatprep.subr.mxu0 0.0
        %974 = vmatpush1.msra.mxu0 %v948
        %975 = vmatprep.subr.mxu0 0.0
        %976 = vmatpush1.msra.mxu0 %v949
        %977 = vmatprep.subr.mxu0 0.0
        %978 = vmatpush1.msra.mxu0 %v950
        %979 = vmatprep.subr.mxu0 0.0
        %980 = vmatpush1.msra.mxu0 %v951
        %981 = vmatprep.subr.mxu0 0.0
        %982 = vmatpush1.msra.mxu0 %v952
        %983 = vmatprep.subr.mxu0 0.0
        %984 = vmatpush1.msra.mxu0 %v953
        %985 = vmatprep.subr.mxu0 0.0
        %986 = vmatpush1.msra.mxu0 %v954
        %987 = vmatprep.subr.mxu0 0.0
        %988 = vmatpush1.msra.mxu0 %v955
        %989 = vmatprep.subr.mxu0 0.0
        %990 = vmatpush1.msra.mxu0 %v956
        %991 = vmatprep.subr.mxu0 0.0
        %992 = vmatpush1.msra.mxu0 %v957
        %993 = vmatprep.subr.mxu0 0.0
        %994 = vmatpush1.msra.mxu0 %v958
        %995 = vmatprep.subr.mxu0 0.0
        %996 = vmatpush1.msra.mxu0 %v959
        %997 = vmatprep.subr.mxu0 0.0
        %998 = vmatpush1.msra.mxu0 %v960
        %999 = vmatprep.subr.mxu0 0.0
        %1000 = vmatpush1.msra.mxu0 %v961
        %1001 = vmatprep.subr.mxu0 0.0
        %1002 = vmatpush1.msra.mxu0 0.0
        %1003 = vmatprep.subr.mxu0 0.0
        %1004 = vmatpush1.msra.mxu0 0.0
        %1005 = vmatprep.subr.mxu0 0.0
        %1006 = vmatpush1.msra.mxu0 0.0
        %1007 = vmatprep.subr.mxu0 0.0
        %1008 = vmatpush1.msra.mxu0 0.0
        %1009 = vmatprep.subr.mxu0 0.0
        %1010 = vmatpush1.msra.mxu0 0.0
        %1011 = vmatprep.subr.mxu0 0.0
        %1012 = vmatpush1.msra.mxu0 0.0
        %1013 = vmatprep.subr.mxu0 0.0
        %1014 = vmatpush1.msra.mxu0 0.0
        %1015 = vmatprep.subr.mxu0 0.0
        %1016 = vmatpush1.msra.mxu0 0.0
        %1017 = vmatprep.subr.mxu0 0.0
        %1018 = vmatpush1.msra.mxu0 0.0
        %1019 = vmatprep.subr.mxu0 0.0
        %1020 = vmatpush1.msra.mxu0 0.0
        %1021 = vmatprep.subr.mxu0 0.0
        %1022 = vmatpush1.msra.mxu0 0.0
        %1023 = vmatprep.subr.mxu0 0.0
        %1024 = vmatpush1.msra.mxu0 0.0
        %1025 = vmatprep.subr.mxu0 0.0
        %1026 = vmatpush1.msra.mxu0 0.0
        %1027 = vmatprep.subr.mxu0 0.0
        %1028 = vmatpush1.msra.mxu0 0.0
        %1029 = vmatprep.subr.mxu0 0.0
        %1030 = vmatpush1.msra.mxu0 0.0
        %1031 = vmatprep.subr.mxu0 0.0
        %1032 = vmatpush1.msra.mxu0 0.0
        %1033 = vmatprep.mubr.f32.mxu0 0.0
        %1034 = vmatmul.mubr.f32.gmra.mrb[0].mxu0 %v930
        %v1035 = vpop.f32.mrb[0].mxu0
        %v1036 = vadd.f32 %v967, %v1035
        %v1037 = vpop.f32.mrb[0].mxu0
        %1038 = vmatprep.mubr.f32.mxu0 0.0
        %1039 = vmatmul.mubr.f32.gmra.mrb[0].mxu0 %v931
        %v1040 = vpop.f32.mrb[0].mxu0
        %v1041 = vadd.f32 %v967, %v1040
        %v1042 = vpop.f32.mrb[0].mxu0
        %1043 = vmatprep.mubr.f32.mxu0 0.0
        %1044 = vmatmul.mubr.f32.gmra.mrb[0].mxu0 %v932
        %v1045 = vpop.f32.mrb[0].mxu0
        %v1046 = vadd.f32 %v967, %v1045
        %v1047 = vpop.f32.mrb[0].mxu0
        %1048 = vmatprep.mubr.f32.mxu0 0.0
        %1049 = vmatmul.mubr.f32.gmra.mrb[0].mxu0 %v933
        %v1050 = vpop.f32.mrb[0].mxu0
        %v1051 = vadd.f32 %v967, %v1050
        %v1052 = vpop.f32.mrb[0].mxu0
        %1053 = vmatprep.mubr.f32.mxu0 0.0
        %1054 = vmatmul.mubr.f32.gmra.mrb[0].mxu0 %v934
        %v1055 = vpop.f32.mrb[0].mxu0
        %v1056 = vadd.f32 %v967, %v1055
        %v1057 = vpop.f32.mrb[0].mxu0
        %1058 = vmatprep.mubr.f32.mxu0 0.0
        %1059 = vmatmul.mubr.f32.gmra.mrb[0].mxu0 %v935
        %v1060 = vpop.f32.mrb[0].mxu0
        %v1061 = vadd.f32 %v967, %v1060
        %v1062 = vpop.f32.mrb[0].mxu0
        %1063 = vmatprep.mubr.f32.mxu0 0.0
        %1064 = vmatmul.mubr.f32.gmra.mrb[0].mxu0 %v936
        %v1065 = vpop.f32.mrb[0].mxu0
        %v1066 = vadd.f32 %v967, %v1065
        %v1067 = vpop.f32.mrb[0].mxu0
        %1068 = vmatprep.mubr.f32.mxu0 0.0
        %1069 = vmatmul.mubr.f32.gmra.mrb[0].mxu0 %v937
        %v1070 = vpop.f32.mrb[0].mxu0
        %v1071 = vadd.f32 %v967, %v1070
        %v1072 = vpop.f32.mrb[0].mxu0
        %1073 = vmatprep.mubr.f32.mxu0 0.0
        %1074 = vmatmul.mubr.f32.gmra.mrb[0].mxu0 %v938
        %v1075 = vpop.f32.mrb[0].mxu0
        %v1076 = vadd.f32 %v967, %v1075
        %v1077 = vpop.f32.mrb[0].mxu0
        %1078 = vmatprep.mubr.f32.mxu0 0.0
        %1079 = vmatmul.mubr.f32.gmra.mrb[0].mxu0 %v939
        %v1080 = vpop.f32.mrb[0].mxu0
        %v1081 = vadd.f32 %v967, %v1080
        %v1082 = vpop.f32.mrb[0].mxu0
        %1083 = vmatprep.mubr.f32.mxu0 0.0
        %1084 = vmatmul.mubr.f32.gmra.mrb[0].mxu0 %v940
        %v1085 = vpop.f32.mrb[0].mxu0
        %v1086 = vadd.f32 %v967, %v1085
        %v1087 = vpop.f32.mrb[0].mxu0
        %1088 = vmatprep.mubr.f32.mxu0 0.0
        %1089 = vmatmul.mubr.f32.gmra.mrb[0].mxu0 %v941
        %v1090 = vpop.f32.mrb[0].mxu0
        %v1091 = vadd.f32 %v967, %v1090
        %v1092 = vpop.f32.mrb[0].mxu0
        %1093 = vmatprep.mubr.f32.mxu0 0.0
        %1094 = vmatmul.mubr.f32.gmra.mrb[0].mxu0 %v942
        %v1095 = vpop.f32.mrb[0].mxu0
        %v1096 = vadd.f32 %v967, %v1095
        %v1097 = vpop.f32.mrb[0].mxu0
        %1098 = vmatprep.mubr.f32.mxu0 0.0
        %1099 = vmatmul.mubr.f32.gmra.mrb[0].mxu0 %v943
        %v1100 = vpop.f32.mrb[0].mxu0
        %v1101 = vadd.f32 %v967, %v1100
        %v1102 = vpop.f32.mrb[0].mxu0
        %1103 = vmatprep.mubr.f32.mxu0 0.0
        %1104 = vmatmul.mubr.f32.gmra.mrb[0].mxu0 %v944
        %v1105 = vpop.f32.mrb[0].mxu0
        %v1106 = vadd.f32 %v967, %v1105
        %v1107 = vpop.f32.mrb[0].mxu0
        %1108 = vmatprep.mubr.f32.mxu0 0.0
        %1109 = vmatmul.mubr.f32.gmra.mrb[0].mxu0 %v945
        %v1110 = vpop.f32.mrb[0].mxu0
        %v1111 = vadd.f32 %v967, %v1110
        %v1112 = vpop.f32.mrb[0].mxu0
        %1113 = vdwg.mxu0
        %v1114 = vmax.f32 %v1036, 0.0
        %v1115 = vmax.f32 %v1041, 0.0
        %v1116 = vmax.f32 %v1046, 0.0
        %v1117 = vmax.f32 %v1051, 0.0
        %v1118 = vmax.f32 %v1056, 0.0
        %v1119 = vmax.f32 %v1061, 0.0
        %v1120 = vmax.f32 %v1066, 0.0
        %v1121 = vmax.f32 %v1071, 0.0
        %v1122 = vmax.f32 %v1076, 0.0
        %v1123 = vmax.f32 %v1081, 0.0
        %v1124 = vmax.f32 %v1086, 0.0
        %v1125 = vmax.f32 %v1091, 0.0
        %v1126 = vmax.f32 %v1096, 0.0
        %v1127 = vmax.f32 %v1101, 0.0
        %v1128 = vmax.f32 %v1106, 0.0
        %v1129 = vmax.f32 %v1111, 0.0
        %v1130 = vld [vmem:[#allocation4] sm:$0xff]
        %v1131 = vld [vmem:[#allocation4 + $0x8] sm:$0xff]
        %v1132 = vld [vmem:[#allocation4 + $0x10] sm:$0xff]
        %v1133 = vld [vmem:[#allocation4 + $0x18] sm:$0xff]
        %v1134 = vld [vmem:[#allocation4 + $0x20] sm:$0xff]
        %v1135 = vld [vmem:[#allocation4 + $0x28] sm:$0xff]
        %v1136 = vld [vmem:[#allocation4 + $0x30] sm:$0xff]
        %v1137 = vld [vmem:[#allocation4 + $0x38] sm:$0xff]
        %v1138 = vld [vmem:[#allocation4 + $0x40] sm:$0xff]
        %v1139 = vld [vmem:[#allocation4 + $0x48] sm:$0xff]
        %v1140 = vld [vmem:[#allocation4 + $0x50] sm:$0xff]
        %v1141 = vld [vmem:[#allocation4 + $0x58] sm:$0xff]
        %v1142 = vld [vmem:[#allocation4 + $0x60] sm:$0xff]
        %v1143 = vld [vmem:[#allocation4 + $0x68] sm:$0xff]
        %v1144 = vld [vmem:[#allocation4 + $0x70] sm:$0xff]
        %v1145 = vld [vmem:[#allocation4 + $0x78] sm:$0xff]
        %v1146 = vld [vmem:[%s10] sm:$0x1]
        %v1148 = vlaneseq
        %v1149 = vshrl.u32 %v1148, 7
        %v1150 = vsub.s32 0, %v1149
        %v1151 = vrot.slane %v1146, %v1150
        %1153 = vmatprep.subr.mxu0 0.0
        %1154 = vmatpush1.msra.mxu0 %v1130
        %1155 = vmatprep.subr.mxu0 0.0
        %1156 = vmatpush1.msra.mxu0 %v1131
        %1157 = vmatprep.subr.mxu0 0.0
        %1158 = vmatpush1.msra.mxu0 %v1132
        %1159 = vmatprep.subr.mxu0 0.0
        %1160 = vmatpush1.msra.mxu0 %v1133
        %1161 = vmatprep.subr.mxu0 0.0
        %1162 = vmatpush1.msra.mxu0 %v1134
        %1163 = vmatprep.subr.mxu0 0.0
        %1164 = vmatpush1.msra.mxu0 %v1135
        %1165 = vmatprep.subr.mxu0 0.0
        %1166 = vmatpush1.msra.mxu0 %v1136
        %1167 = vmatprep.subr.mxu0 0.0
        %1168 = vmatpush1.msra.mxu0 %v1137
        %1169 = vmatprep.subr.mxu0 0.0
        %1170 = vmatpush1.msra.mxu0 %v1138
        %1171 = vmatprep.subr.mxu0 0.0
        %1172 = vmatpush1.msra.mxu0 %v1139
        %1173 = vmatprep.subr.mxu0 0.0
        %1174 = vmatpush1.msra.mxu0 %v1140
        %1175 = vmatprep.subr.mxu0 0.0
        %1176 = vmatpush1.msra.mxu0 %v1141
        %1177 = vmatprep.subr.mxu0 0.0
        %1178 = vmatpush1.msra.mxu0 %v1142
        %1179 = vmatprep.subr.mxu0 0.0
        %1180 = vmatpush1.msra.mxu0 %v1143
        %1181 = vmatprep.subr.mxu0 0.0
        %1182 = vmatpush1.msra.mxu0 %v1144
        %1183 = vmatprep.subr.mxu0 0.0
        %1184 = vmatpush1.msra.mxu0 %v1145
        %1185 = vmatprep.subr.mxu0 0.0
        %1186 = vmatpush1.msra.mxu0 0.0
        %1187 = vmatprep.subr.mxu0 0.0
        %1188 = vmatpush1.msra.mxu0 0.0
        %1189 = vmatprep.subr.mxu0 0.0
        %1190 = vmatpush1.msra.mxu0 0.0
        %1191 = vmatprep.subr.mxu0 0.0
        %1192 = vmatpush1.msra.mxu0 0.0
        %1193 = vmatprep.subr.mxu0 0.0
        %1194 = vmatpush1.msra.mxu0 0.0
        %1195 = vmatprep.subr.mxu0 0.0
        %1196 = vmatpush1.msra.mxu0 0.0
        %1197 = vmatprep.subr.mxu0 0.0
        %1198 = vmatpush1.msra.mxu0 0.0
        %1199 = vmatprep.subr.mxu0 0.0
        %1200 = vmatpush1.msra.mxu0 0.0
        %1201 = vmatprep.subr.mxu0 0.0
        %1202 = vmatpush1.msra.mxu0 0.0
        %1203 = vmatprep.subr.mxu0 0.0
        %1204 = vmatpush1.msra.mxu0 0.0
        %1205 = vmatprep.subr.mxu0 0.0
        %1206 = vmatpush1.msra.mxu0 0.0
        %1207 = vmatprep.subr.mxu0 0.0
        %1208 = vmatpush1.msra.mxu0 0.0
        %1209 = vmatprep.subr.mxu0 0.0
        %1210 = vmatpush1.msra.mxu0 0.0
        %1211 = vmatprep.subr.mxu0 0.0
        %1212 = vmatpush1.msra.mxu0 0.0
        %1213 = vmatprep.subr.mxu0 0.0
        %1214 = vmatpush1.msra.mxu0 0.0
        %1215 = vmatprep.subr.mxu0 0.0
        %1216 = vmatpush1.msra.mxu0 0.0
        %1217 = vmatprep.mubr.f32.mxu0 0.0
        %1218 = vmatmul.mubr.f32.gmra.mrb[0].mxu0 %v1114
        %v1219 = vpop.f32.mrb[0].mxu0
        %v1220 = vadd.f32 %v1151, %v1219
        %v1221 = vpop.f32.mrb[0].mxu0
        %1222 = vmatprep.mubr.f32.mxu0 0.0
        %1223 = vmatmul.mubr.f32.gmra.mrb[0].mxu0 %v1115
        %v1224 = vpop.f32.mrb[0].mxu0
        %v1225 = vadd.f32 %v1151, %v1224
        %v1226 = vpop.f32.mrb[0].mxu0
        %1227 = vmatprep.mubr.f32.mxu0 0.0
        %1228 = vmatmul.mubr.f32.gmra.mrb[0].mxu0 %v1116
        %v1229 = vpop.f32.mrb[0].mxu0
        %v1230 = vadd.f32 %v1151, %v1229
        %v1231 = vpop.f32.mrb[0].mxu0
        %1232 = vmatprep.mubr.f32.mxu0 0.0
        %1233 = vmatmul.mubr.f32.gmra.mrb[0].mxu0 %v1117
        %v1234 = vpop.f32.mrb[0].mxu0
        %v1235 = vadd.f32 %v1151, %v1234
        %v1236 = vpop.f32.mrb[0].mxu0
        %1237 = vmatprep.mubr.f32.mxu0 0.0
        %1238 = vmatmul.mubr.f32.gmra.mrb[0].mxu0 %v1118
        %v1239 = vpop.f32.mrb[0].mxu0
        %v1240 = vadd.f32 %v1151, %v1239
        %v1241 = vpop.f32.mrb[0].mxu0
        %1242 = vmatprep.mubr.f32.mxu0 0.0
        %1243 = vmatmul.mubr.f32.gmra.mrb[0].mxu0 %v1119
        %v1244 = vpop.f32.mrb[0].mxu0
        %v1245 = vadd.f32 %v1151, %v1244
        %v1246 = vpop.f32.mrb[0].mxu0
        %1247 = vmatprep.mubr.f32.mxu0 0.0
        %1248 = vmatmul.mubr.f32.gmra.mrb[0].mxu0 %v1120
        %v1249 = vpop.f32.mrb[0].mxu0
        %v1250 = vadd.f32 %v1151, %v1249
        %v1251 = vpop.f32.mrb[0].mxu0
        %1252 = vmatprep.mubr.f32.mxu0 0.0
        %1253 = vmatmul.mubr.f32.gmra.mrb[0].mxu0 %v1121
        %v1254 = vpop.f32.mrb[0].mxu0
        %v1255 = vadd.f32 %v1151, %v1254
        %v1256 = vpop.f32.mrb[0].mxu0
        %1257 = vmatprep.mubr.f32.mxu0 0.0
        %1258 = vmatmul.mubr.f32.gmra.mrb[0].mxu0 %v1122
        %v1259 = vpop.f32.mrb[0].mxu0
        %v1260 = vadd.f32 %v1151, %v1259
        %v1261 = vpop.f32.mrb[0].mxu0
        %1262 = vmatprep.mubr.f32.mxu0 0.0
        %1263 = vmatmul.mubr.f32.gmra.mrb[0].mxu0 %v1123
        %v1264 = vpop.f32.mrb[0].mxu0
        %v1265 = vadd.f32 %v1151, %v1264
        %v1266 = vpop.f32.mrb[0].mxu0
        %1267 = vmatprep.mubr.f32.mxu0 0.0
        %1268 = vmatmul.mubr.f32.gmra.mrb[0].mxu0 %v1124
        %v1269 = vpop.f32.mrb[0].mxu0
        %v1270 = vadd.f32 %v1151, %v1269
        %v1271 = vpop.f32.mrb[0].mxu0
        %1272 = vmatprep.mubr.f32.mxu0 0.0
        %1273 = vmatmul.mubr.f32.gmra.mrb[0].mxu0 %v1125
        %v1274 = vpop.f32.mrb[0].mxu0
        %v1275 = vadd.f32 %v1151, %v1274
        %v1276 = vpop.f32.mrb[0].mxu0
        %1277 = vmatprep.mubr.f32.mxu0 0.0
        %1278 = vmatmul.mubr.f32.gmra.mrb[0].mxu0 %v1126
        %v1279 = vpop.f32.mrb[0].mxu0
        %v1280 = vadd.f32 %v1151, %v1279
        %v1281 = vpop.f32.mrb[0].mxu0
        %1282 = vmatprep.mubr.f32.mxu0 0.0
        %1283 = vmatmul.mubr.f32.gmra.mrb[0].mxu0 %v1127
        %v1284 = vpop.f32.mrb[0].mxu0
        %v1285 = vadd.f32 %v1151, %v1284
        %v1286 = vpop.f32.mrb[0].mxu0
        %1287 = vmatprep.mubr.f32.mxu0 0.0
        %1288 = vmatmul.mubr.f32.gmra.mrb[0].mxu0 %v1128
        %v1289 = vpop.f32.mrb[0].mxu0
        %v1290 = vadd.f32 %v1151, %v1289
        %v1291 = vpop.f32.mrb[0].mxu0
        %1292 = vmatprep.mubr.f32.mxu0 0.0
        %1293 = vmatmul.mubr.f32.gmra.mrb[0].mxu0 %v1129
        %v1294 = vpop.f32.mrb[0].mxu0
        %v1295 = vadd.f32 %v1151, %v1294
        %v1296 = vpop.f32.mrb[0].mxu0
        %1297 = vdwg.mxu0
        %vm1298 = vcmask 31744
        %1299 = vst.msk [vmem:[%s418] sm:$0xff] %vm1298, %v1220
        %1300 = vst.msk [vmem:[%s418 + $0x8] sm:$0xff] %vm1298, %v1225
        %1301 = vst.msk [vmem:[%s418 + $0x10] sm:$0xff] %vm1298, %v1230
        %1302 = vst.msk [vmem:[%s418 + $0x18] sm:$0xff] %vm1298, %v1235
        %1303 = vst.msk [vmem:[%s418 + $0x20] sm:$0xff] %vm1298, %v1240
        %1304 = vst.msk [vmem:[%s418 + $0x28] sm:$0xff] %vm1298, %v1245
        %1305 = vst.msk [vmem:[%s418 + $0x30] sm:$0xff] %vm1298, %v1250
        %1306 = vst.msk [vmem:[%s418 + $0x38] sm:$0xff] %vm1298, %v1255
        %1307 = vst.msk [vmem:[%s418 + $0x40] sm:$0xff] %vm1298, %v1260
        %1308 = vst.msk [vmem:[%s418 + $0x48] sm:$0xff] %vm1298, %v1265
        %1309 = vst.msk [vmem:[%s418 + $0x50] sm:$0xff] %vm1298, %v1270
        %1310 = vst.msk [vmem:[%s418 + $0x58] sm:$0xff] %vm1298, %v1275
        %1311 = vst.msk [vmem:[%s418 + $0x60] sm:$0xff] %vm1298, %v1280
        %1312 = vst.msk [vmem:[%s418 + $0x68] sm:$0xff] %vm1298, %v1285
        %1313 = vst.msk [vmem:[%s418 + $0x70] sm:$0xff] %vm1298, %v1290
        %1314 = vst.msk [vmem:[%s418 + $0x78] sm:$0xff] %vm1298, %v1295
        %s1315 = smul.u32 16, %s24
        %p1316 = scmp.lt.s32.totalorder %s1315, 31
        %s1317 = scalar_select %p1316, %s1315, 31
        %s1318 = smul.addr %s1317, 8
        %s1319 = scalar_lea.vmem %s11, %s1318
        // Predicated region
        $region73: #{orbitnet_forward.1} parent=63 // pred_check
          %p1320 = pneg %p278
        $region74: #{orbitnet_forward.1} parent=63 // pred_check_branch
          %1322 = sbr.rel (%p1320) target = $region76
        $region75: #{orbitnet_forward.1} parent=63 // pred_region
          %s1323 = smul.u32 16, %s24
        $region76: #{orbitnet_forward.1} parent=63 // pred_fallthru
          _
      $region64: #{orbitnet_forward.1} parent=5 // pred_fallthru
        _
      %p1324 = scmp.le.s32.totalorder 2, %s19
      // Predicated region
      $region77: #{orbitnet_forward.1} parent=5 // pred_check
        %p1325 = pneg %p1324
      $region78: #{orbitnet_forward.1} parent=5 // pred_check_branch
        %1327 = sbr.rel (%p1325) target = $region80
      $region79: #{orbitnet_forward.1} parent=5 // pred_region
        %s1328 = ssub.s32 %s19, 2
        // Predicated region
        $region81: #{orbitnet_forward.1} parent=79 // pred_check
          %p1329 = pneg %p284
        $region82: #{orbitnet_forward.1} parent=79 // pred_check_branch
          %1331 = sbr.rel (%p1329) target = $region84
        $region83: #{orbitnet_forward.1} parent=79 // pred_region
          %s1332 = smul.u32 16, %s25
          %p1333 = scmp.lt.s32.totalorder %s1332, 31
          %s1334 = scalar_select %p1333, %s1332, 31
          %s1335 = smul.addr %s1334, 8
          %s1336 = scalar_lea.vmem %s11, %s1335
        $region84: #{orbitnet_forward.1} parent=79 // pred_fallthru
          _
      $region80: #{orbitnet_forward.1} parent=5 // pred_fallthru
        _
    $region6: #{orbitnet_forward.1} parent=1 // loop_footer
      %s23 = sadd.s32 1, %s19
    $region7: #{orbitnet_forward.1} parent=1 // loop_footer_branch
      %18 = sbr.rel target = $region3
    $region8: #{orbitnet_forward.1} parent=1 // loop_exit
      _
    %1337 = vsyncpa [#allocation3], 1
    %s1338 = scalar_lea.sflag [#allocation3], 1
    %1339 = vsyncpa %s1338, 1
    %1340 = vsyncpa [#allocation5], 1

</llo_original>
